<compile_context>
chip_gen: v7x
topology: tpu7x:2x2x1
jax: 0.10.0
libtpu: 0.0.40
codegen_flags: <defaults>
</compile_context>

<pallas_src>
import functools

import jax
import jax.numpy as jnp
from jax import lax
from jax.experimental import pallas as pl
from jax.experimental.pallas import tpu as pltpu


def _round_up(x, m):
    return (x + m - 1) // m * m


def _pick_tile_h(h, w, max_rows=1024):
    """Largest divisor of h whose row tile (tile_h*w) is lane-dense and <= max_rows."""
    divs = [d for d in range(1, h + 1) if h % d == 0]
    fit = [d for d in divs if d * w <= max_rows] or [min(divs)]
    dense = [d for d in fit if (d * w) % 128 == 0]
    return max(dense) if dense else max(fit)


# -----------------------------------------------------------------------------
# Fused kernel (one grid step = one batch element x one row tile):
#   h1  = relu(x_slab @ W1' + b1)                  cna1 (BN folded into W1')
#   h2  = relu(im2col(h1) @ W2' + b2)              cna2 3x3 as ONE K=9*width dot
#   out = relu(Wt' . [h2 | x]^T + bt)              conv3+bn3 + recover + residual
# Output stored as (C4, tile_rows) -> NCHW, lane-dense.
# -----------------------------------------------------------------------------
def _bottleneck_kernel(xp_ref, w1_ref, b1_ref, w2_ref, b2_ref, wt_ref, bt_ref,
                       o_ref, *, H, W, TH):
    HP2 = TH + 2                       # row tile + 1-row halo on each side
    WP = xp_ref.shape[2]               # padded width (>= W+2, multiple of 8)
    cin = w1_ref.shape[0]
    wd = w1_ref.shape[1]

    t = pl.program_id(1)
    row0 = t * TH                      # first padded row of this tile's slab
    if TH % 8 == 0:
        row0 = pl.multiple_of(row0, 8)

    # --- cna1 over the haloed slab, entirely in VMEM (no HBM round trip) -----
    xs = xp_ref[0, pl.ds(row0, HP2), :, :]                       # (HP2, WP, Cin) bf16
    h1 = jnp.dot(xs.reshape(HP2 * WP, cin), w1_ref[...],
                 preferred_element_type=jnp.float32)
    h1 = jnp.maximum(h1 + b1_ref[...], 0.0).reshape(HP2, WP, wd)

    # Zero the 3x3 conv's spatial zero padding: cna1 applied to the padded
    # zeros would give relu(b1) != 0, so mask positions outside the image.
    lr = lax.broadcasted_iota(jnp.int32, (HP2, WP, 1), 0)
    lc = lax.broadcasted_iota(jnp.int32, (HP2, WP, 1), 1)
    pr = row0 + lr                                               # padded-image row
    inside = (pr >= 1) & (pr <= H) & (lc >= 1) & (lc <= W)
    h1 = jnp.where(inside, h1, 0.0).astype(jnp.bfloat16)

    # --- cna2: 3x3 / stride-1 conv as a single im2col matmul (K = 9*width) ---
    taps = [h1[dy:dy + TH, dx:dx + W, :]
            for dy in range(3) for dx in range(3)]
    im2col = jnp.concatenate(taps, axis=-1).reshape(TH * W, 9 * wd)
    h2 = jnp.dot(im2col, w2_ref[...], preferred_element_type=jnp.float32)
    h2 = jnp.maximum(h2 + b2_ref[...], 0.0).astype(jnp.bfloat16)

    # --- conv3+bn3 and recover+bn+identity merged into one matmul ------------
    x_int = xs[1:TH + 1, 1:W + 1, :].reshape(TH * W, cin)        # tile's own x rows
    tail = jnp.concatenate([h2, x_int], axis=-1)                 # (TH*W, wd+cin)
    # contract on the last dim of both operands -> output already transposed
    outT = lax.dot_general(wt_ref[...], tail,
                           dimension_numbers=(((1,), (1,)), ((), ())),
                           preferred_element_type=jnp.float32)   # (C4, TH*W)
    o_ref[0] = jnp.maximum(outT + bt_ref[...], 0.0).astype(o_ref.dtype)


# -----------------------------------------------------------------------------
# Parameter setup / folding / wrapper
# -----------------------------------------------------------------------------
def fold_bn(gamma, beta, mean, var, eps=1e-5):
    s = gamma / jnp.sqrt(var + eps)
    b = beta - mean * s
    return s.reshape(1, -1), b.reshape(1, -1)


def init_params(key, inplane, plane, group=1, base_width=64):
    width = int(plane * (base_width / 64.0)) * group
    c4 = plane * 4  # expansion = 4
    ks = jax.random.split(key, 8)

    def bn_params(k, c):
        k1, k2, k3, k4 = jax.random.split(k, 4)
        gamma = jax.random.uniform(k1, (c,), jnp.float32, 0.5, 1.5)
        beta = jax.random.normal(k2, (c,), jnp.float32) * 0.1
        mean = jax.random.normal(k3, (c,), jnp.float32) * 0.1
        var = jax.random.uniform(k4, (c,), jnp.float32, 0.5, 1.5)
        return gamma, beta, mean, var

    params = {
        "w1": jax.random.normal(ks[0], (inplane, width), jnp.float32) * 0.1,      # cna1 1x1 [I,O]
        "bn1": bn_params(ks[1], width),
        "w2": jax.random.normal(ks[2], (3, 3, width, width), jnp.float32) * 0.1,  # cna2 3x3 HWIO
        "bn2": bn_params(ks[3], width),
        "w3": jax.random.normal(ks[4], (width, c4), jnp.float32) * 0.1,           # conv3 1x1
        "bn3": bn_params(ks[5], c4),
        "wr": jax.random.normal(ks[6], (inplane, c4), jnp.float32) * 0.1,         # recover 1x1
        "bnr": bn_params(ks[7], c4),
    }
    return params, width, c4


def bottleneck_forward(x_nchw, params, *, tile_h=None):
    """Bottleneck forward (stride=1, group=1, downsample=None). NCHW -> NCHW."""
    n, cin, h, w = x_nchw.shape
    wd = params["w1"].shape[1]
    c4 = params["w3"].shape[1]
    assert cin == c4, "module's residual add needs inplane == plane*expansion"

    if tile_h is None:
        tile_h = _pick_tile_h(h, w)
    assert h % tile_h == 0, "TODO(synk): ragged row tiles not handled"
    assert tile_h == h or (tile_h * w) % 128 == 0, \
        "row tile must yield a lane-dense (multiple-of-128) output block"

    s1, b1 = fold_bn(*params["bn1"])
    s2, b2 = fold_bn(*params["bn2"])
    s3, b3 = fold_bn(*params["bn3"])
    sr, br = fold_bn(*params["bnr"])

    # Fold BN scales into weights; merge conv3/recover; fold identity into wr.
    w1f = (params["w1"] * s1).astype(jnp.bfloat16)                       # (Cin, WD)
    w2f = (params["w2"] * s2).reshape(9 * wd, wd).astype(jnp.bfloat16)   # (9*WD, WD)
    w3f = params["w3"] * s3                                              # (WD, C4)
    wrf = params["wr"] * sr + jnp.eye(cin, c4, dtype=jnp.float32)        # (Cin, C4)
    wt_t = jnp.concatenate([w3f, wrf], axis=0).T.astype(jnp.bfloat16)    # (C4, WD+Cin)
    bt_t = (b3 + br).reshape(c4, 1)                                      # (C4, 1) f32

    # Channels-last bf16 input with a 1-pixel halo; right-pad width so the
    # padded width is a multiple of 8 (keeps in-kernel reshapes layout-preserving).
    wp = _round_up(w + 2, 8)
    x_nhwc = jnp.transpose(x_nchw, (0, 2, 3, 1)).astype(jnp.bfloat16)
    x_pad = jnp.pad(x_nhwc, ((0, 0), (1, 1), (1, wp - w - 1), (0, 0)))

    kernel = functools.partial(_bottleneck_kernel, H=h, W=w, TH=tile_h)
    out = pl.pallas_call(
        kernel,
        out_shape=jax.ShapeDtypeStruct((n, c4, h * w), jnp.float32),
        grid=(n, h // tile_h),
        in_specs=[
            # full padded image per batch element (block index constant in t ->
            # stays VMEM-resident across the row-tile loop); halo sliced in-kernel
            pl.BlockSpec((1, h + 2, wp, cin), lambda b, t: (b, 0, 0, 0)),
            pl.BlockSpec((cin, wd), lambda b, t: (0, 0)),
            pl.BlockSpec((1, wd), lambda b, t: (0, 0)),
            pl.BlockSpec((9 * wd, wd), lambda b, t: (0, 0)),
            pl.BlockSpec((1, wd), lambda b, t: (0, 0)),
            pl.BlockSpec((c4, wd + cin), lambda b, t: (0, 0)),
            pl.BlockSpec((c4, 1), lambda b, t: (0, 0)),
        ],
        # lane-dense NCHW output: last dim of each stored block is tile_h*w
        out_specs=pl.BlockSpec((1, c4, tile_h * w), lambda b, t: (b, 0, t)),
        compiler_params=pltpu.CompilerParams(
            dimension_semantics=("parallel", "parallel"),
            vmem_limit_bytes=48 * 1024 * 1024,  # > 16/32 MiB defaults, < v7x 64 MiB
        ),
    )(x_pad, w1f, b1, w2f, b2, wt_t, bt_t)
    return out.reshape(n, c4, h, w)


# -----------------------------------------------------------------------------
# Pure-JAX reference (mirrors the PyTorch forward semantics, f32)
# -----------------------------------------------------------------------------
def reference_forward(x_nchw, params, eps=1e-5):
    x = jnp.transpose(x_nchw, (0, 2, 3, 1)).astype(jnp.float32)

    def conv(v, w, padding):
        return lax.conv_general_dilated(v, w, (1, 1), padding,
                                        dimension_numbers=("NHWC", "HWIO", "NHWC"))

    def bn(v, p):
        g, b, m, var = p
        return (v - m) / jnp.sqrt(var + eps) * g + b

    h1 = jax.nn.relu(bn(conv(x, params["w1"][None, None], "VALID"), params["bn1"]))
    h2 = jax.nn.relu(bn(conv(h1, params["w2"], ((1, 1), (1, 1))), params["bn2"]))
    out = bn(conv(h2, params["w3"][None, None], "VALID"), params["bn3"])
    ident2 = bn(conv(x, params["wr"][None, None], "VALID"), params["bnr"])
    identity = x + ident2              # downsample=None; stride=1 -> no maxpool
    out = jax.nn.relu(out + identity)
    return jnp.transpose(out, (0, 3, 1, 2))


if __name__ == "__main__":
    key = jax.random.PRNGKey(0)
    k_x, k_p = jax.random.split(key)

    # inplane == plane * expansion so the module's residual add is well-formed.
    inplane, plane, group = 16, 4, 1
    n, h, w = 2, 16, 16

    params, width, c4 = init_params(k_p, inplane, plane, group)
    x = jax.random.normal(k_x, (n, inplane, h, w), jnp.float32)

    fwd = jax.jit(functools.partial(bottleneck_forward, tile_h=8))  # 2x2 grid: exercises the halo path
    out = jax.block_until_ready(fwd(x, params))

    ref = reference_forward(x, params)
    assert out.shape == (n, c4, h, w)
    err = float(jnp.max(jnp.abs(out - ref)))
    assert err < 2e-1, f"max abs err {err}"   # bf16 compute vs f32 reference
    print("KERNEL_OK")
</pallas_src>

<mosaic_0001>
module attributes {stable_mosaic.version = 11 : i64} {
  func.func @_bottleneck_kernel(%arg0: i32, %arg1: i32, %arg2: memref<1x18x24x16xbf16, #tpu.memory_space<vmem>>, %arg3: memref<16x4xbf16, #tpu.memory_space<vmem>>, %arg4: memref<1x4xf32, #tpu.memory_space<vmem>>, %arg5: memref<36x4xbf16, #tpu.memory_space<vmem>>, %arg6: memref<1x4xf32, #tpu.memory_space<vmem>>, %arg7: memref<16x20xbf16, #tpu.memory_space<vmem>>, %arg8: memref<16x1xf32, #tpu.memory_space<vmem>>, %arg9: memref<1x16x128xf32, #tpu.memory_space<vmem>>) attributes {dimension_semantics = [#tpu.dimension_semantics<parallel>, #tpu.dimension_semantics<parallel>], iteration_bounds = array<i64: 2, 2>, scalar_prefetch = 0 : i64, scratch_operands = 0 : i64, tpu.core_type = #tpu.core_type<tc>, window_params = [{transform_indices = @transform_0, window_bounds = array<i64: 1, 18, 24, 16>}, {pipeline_mode = #tpu.pipeline_mode<synchronous>, transform_indices = @transform_1, window_bounds = array<i64: 16, 4>}, {pipeline_mode = #tpu.pipeline_mode<synchronous>, transform_indices = @transform_2, window_bounds = array<i64: 1, 4>}, {pipeline_mode = #tpu.pipeline_mode<synchronous>, transform_indices = @transform_3, window_bounds = array<i64: 36, 4>}, {pipeline_mode = #tpu.pipeline_mode<synchronous>, transform_indices = @transform_4, window_bounds = array<i64: 1, 4>}, {pipeline_mode = #tpu.pipeline_mode<synchronous>, transform_indices = @transform_5, window_bounds = array<i64: 16, 20>}, {pipeline_mode = #tpu.pipeline_mode<synchronous>, transform_indices = @transform_6, window_bounds = array<i64: 16, 1>}, {transform_indices = @transform_7, window_bounds = array<i64: 1, 16, 128>}]} {
    %c8_i32 = arith.constant 8 : i32
    %0 = arith.muli %arg1, %c8_i32 : i32
    %1 = tpu.assume_multiple %0, 8 : i32
    %c0 = arith.constant 0 : index
    %2 = arith.index_cast %1 : i32 to index
    %c0_0 = arith.constant 0 : index
    %c0_1 = arith.constant 0 : index
    %3 = vector.load %arg2[%c0, %2, %c0_0, %c0_1] : memref<1x18x24x16xbf16, #tpu.memory_space<vmem>>, vector<1x10x24x16xbf16>
    %4 = vector.shape_cast %3 : vector<1x10x24x16xbf16> to vector<10x24x16xbf16>
    %5 = vector.shape_cast %4 : vector<10x24x16xbf16> to vector<240x16xbf16>
    %c0_2 = arith.constant 0 : index
    %c0_3 = arith.constant 0 : index
    %6 = vector.load %arg3[%c0_2, %c0_3] : memref<16x4xbf16, #tpu.memory_space<vmem>>, vector<16x4xbf16>
    %cst = arith.constant dense<0.000000e+00> : vector<240x4xf32>
    %7 = tpu.matmul %5, %6, %cst {dimension_numbers = #tpu.dot_dimension_numbers<[1], [0], [0], [1], [0, 0, 1, 1], [], []>} : vector<240x16xbf16>, vector<16x4xbf16>, vector<240x4xf32> -> vector<240x4xf32>
    %c0_4 = arith.constant 0 : index
    %c0_5 = arith.constant 0 : index
    %8 = vector.load %arg4[%c0_4, %c0_5] : memref<1x4xf32, #tpu.memory_space<vmem>>, vector<1x4xf32>
    %9 = vector.broadcast %8 : vector<1x4xf32> to vector<240x4xf32>
    %10 = arith.addf %7, %9 : vector<240x4xf32>
    %cst_6 = arith.constant 0.000000e+00 : f32
    %11 = vector.broadcast %cst_6 : f32 to vector<240x4xf32>
    %12 = arith.maximumf %10, %11 : vector<240x4xf32>
    %13 = vector.shape_cast %12 : vector<240x4xf32> to vector<10x24x4xf32>
    %14 = tpu.iota {dimensions = array<i32: 0>} : vector<10x24x1xi32>
    %15 = tpu.iota {dimensions = array<i32: 1>} : vector<10x24x1xi32>
    %16 = vector.broadcast %1 : i32 to vector<10x24x1xi32>
    %17 = arith.addi %16, %14 : vector<10x24x1xi32>
    %c1_i32 = arith.constant 1 : i32
    %18 = vector.broadcast %c1_i32 : i32 to vector<10x24x1xi32>
    %19 = arith.cmpi sge, %17, %18 : vector<10x24x1xi32>
    %c16_i32 = arith.constant 16 : i32
    %20 = vector.broadcast %c16_i32 : i32 to vector<10x24x1xi32>
    %21 = arith.cmpi sle, %17, %20 : vector<10x24x1xi32>
    %22 = arith.andi %19, %21 : vector<10x24x1xi1>
    %c1_i32_7 = arith.constant 1 : i32
    %23 = vector.broadcast %c1_i32_7 : i32 to vector<10x24x1xi32>
    %24 = arith.cmpi sge, %15, %23 : vector<10x24x1xi32>
    %25 = arith.andi %22, %24 : vector<10x24x1xi1>
    %c16_i32_8 = arith.constant 16 : i32
    %26 = vector.broadcast %c16_i32_8 : i32 to vector<10x24x1xi32>
    %27 = arith.cmpi sle, %15, %26 : vector<10x24x1xi32>
    %28 = arith.andi %25, %27 : vector<10x24x1xi1>
    %cst_9 = arith.constant 0.000000e+00 : f32
    %29 = vector.shape_cast %28 : vector<10x24x1xi1> to vector<10x24x1xi1>
    %30 = vector.broadcast %29 : vector<10x24x1xi1> to vector<10x24x4xi1>
    %31 = vector.broadcast %cst_9 : f32 to vector<10x24x4xf32>
    %32 = arith.select %30, %13, %31 : vector<10x24x4xi1>, vector<10x24x4xf32>
    %33 = arith.truncf %32 : vector<10x24x4xf32> to vector<10x24x4xbf16>
    %34 = vector.extract_strided_slice %33 {offsets = [0, 0, 0], sizes = [8, 16, 4], strides = [1, 1, 1]} : vector<10x24x4xbf16> to vector<8x16x4xbf16>
    %35 = vector.extract_strided_slice %33 {offsets = [0, 1, 0], sizes = [8, 16, 4], strides = [1, 1, 1]} : vector<10x24x4xbf16> to vector<8x16x4xbf16>
    %36 = vector.extract_strided_slice %33 {offsets = [0, 2, 0], sizes = [8, 16, 4], strides = [1, 1, 1]} : vector<10x24x4xbf16> to vector<8x16x4xbf16>
    %37 = vector.extract_strided_slice %33 {offsets = [1, 0, 0], sizes = [8, 16, 4], strides = [1, 1, 1]} : vector<10x24x4xbf16> to vector<8x16x4xbf16>
    %38 = vector.extract_strided_slice %33 {offsets = [1, 1, 0], sizes = [8, 16, 4], strides = [1, 1, 1]} : vector<10x24x4xbf16> to vector<8x16x4xbf16>
    %39 = vector.extract_strided_slice %33 {offsets = [1, 2, 0], sizes = [8, 16, 4], strides = [1, 1, 1]} : vector<10x24x4xbf16> to vector<8x16x4xbf16>
    %40 = vector.extract_strided_slice %33 {offsets = [2, 0, 0], sizes = [8, 16, 4], strides = [1, 1, 1]} : vector<10x24x4xbf16> to vector<8x16x4xbf16>
    %41 = vector.extract_strided_slice %33 {offsets = [2, 1, 0], sizes = [8, 16, 4], strides = [1, 1, 1]} : vector<10x24x4xbf16> to vector<8x16x4xbf16>
    %42 = vector.extract_strided_slice %33 {offsets = [2, 2, 0], sizes = [8, 16, 4], strides = [1, 1, 1]} : vector<10x24x4xbf16> to vector<8x16x4xbf16>
    %43 = tpu.concatenate %34, %35, %36, %37, %38, %39, %40, %41, %42 in 2 : vector<8x16x4xbf16>, vector<8x16x4xbf16>, vector<8x16x4xbf16>, vector<8x16x4xbf16>, vector<8x16x4xbf16>, vector<8x16x4xbf16>, vector<8x16x4xbf16>, vector<8x16x4xbf16>, vector<8x16x4xbf16> -> vector<8x16x36xbf16>
    %44 = vector.shape_cast %43 : vector<8x16x36xbf16> to vector<128x36xbf16>
    %c0_10 = arith.constant 0 : index
    %c0_11 = arith.constant 0 : index
    %45 = vector.load %arg5[%c0_10, %c0_11] : memref<36x4xbf16, #tpu.memory_space<vmem>>, vector<36x4xbf16>
    %cst_12 = arith.constant dense<0.000000e+00> : vector<128x4xf32>
    %46 = tpu.matmul %44, %45, %cst_12 {dimension_numbers = #tpu.dot_dimension_numbers<[1], [0], [0], [1], [0, 0, 1, 1], [], []>} : vector<128x36xbf16>, vector<36x4xbf16>, vector<128x4xf32> -> vector<128x4xf32>
    %c0_13 = arith.constant 0 : index
    %c0_14 = arith.constant 0 : index
    %47 = vector.load %arg6[%c0_13, %c0_14] : memref<1x4xf32, #tpu.memory_space<vmem>>, vector<1x4xf32>
    %48 = vector.broadcast %47 : vector<1x4xf32> to vector<128x4xf32>
    %49 = arith.addf %46, %48 : vector<128x4xf32>
    %cst_15 = arith.constant 0.000000e+00 : f32
    %50 = vector.broadcast %cst_15 : f32 to vector<128x4xf32>
    %51 = arith.maximumf %49, %50 : vector<128x4xf32>
    %52 = arith.truncf %51 : vector<128x4xf32> to vector<128x4xbf16>
    %53 = vector.extract_strided_slice %4 {offsets = [1, 1, 0], sizes = [8, 16, 16], strides = [1, 1, 1]} : vector<10x24x16xbf16> to vector<8x16x16xbf16>
    %54 = vector.shape_cast %53 : vector<8x16x16xbf16> to vector<128x16xbf16>
    %55 = tpu.concatenate %52, %54 in 1 : vector<128x4xbf16>, vector<128x16xbf16> -> vector<128x20xbf16>
    %c0_16 = arith.constant 0 : index
    %c0_17 = arith.constant 0 : index
    %56 = vector.load %arg7[%c0_16, %c0_17] : memref<16x20xbf16, #tpu.memory_space<vmem>>, vector<16x20xbf16>
    %cst_18 = arith.constant dense<0.000000e+00> : vector<16x128xf32>
    %57 = tpu.matmul %56, %55, %cst_18 {dimension_numbers = #tpu.dot_dimension_numbers<[1], [1], [0], [0], [0, 0, 1, 0], [], []>} : vector<16x20xbf16>, vector<128x20xbf16>, vector<16x128xf32> -> vector<16x128xf32>
    %c0_19 = arith.constant 0 : index
    %c0_20 = arith.constant 0 : index
    %58 = vector.load %arg8[%c0_19, %c0_20] : memref<16x1xf32, #tpu.memory_space<vmem>>, vector<16x1xf32>
    %59 = vector.broadcast %58 : vector<16x1xf32> to vector<16x128xf32>
    %60 = arith.addf %57, %59 : vector<16x128xf32>
    %cst_21 = arith.constant 0.000000e+00 : f32
    %61 = vector.broadcast %cst_21 : f32 to vector<16x128xf32>
    %62 = arith.maximumf %60, %61 : vector<16x128xf32>
    %c0_22 = arith.constant 0 : index
    %c0_23 = arith.constant 0 : index
    %c0_24 = arith.constant 0 : index
    %63 = vector.load %arg9[%c0_22, %c0_23, %c0_24] : memref<1x16x128xf32, #tpu.memory_space<vmem>>, vector<1x16x128xf32>
    %64 = vector.shape_cast %63 : vector<1x16x128xf32> to vector<16x128xf32>
    %65 = vector.shape_cast %62 : vector<16x128xf32> to vector<1x16x128xf32>
    tpu.vector_store %arg9[%c0_22, %c0_23, %c0_24], %65 {strides = array<i32>} : memref<1x16x128xf32, #tpu.memory_space<vmem>>, vector<1x16x128xf32>,
    return
  }
  func.func @transform_0(%arg0: i32, %arg1: i32) -> (i32, i32, i32, i32) {
    %c0_i32 = arith.constant 0 : i32
    %c0_i32_0 = arith.constant 0 : i32
    %c0_i32_1 = arith.constant 0 : i32
    %c0_i32_2 = arith.constant 0 : i32
    return %arg0, %c0_i32, %c0_i32_0, %c0_i32_1 : i32, i32, i32, i32
  }
  func.func @transform_1(%arg0: i32, %arg1: i32) -> (i32, i32) {
    %c0_i32 = arith.constant 0 : i32
    %c0_i32_0 = arith.constant 0 : i32
    %c0_i32_1 = arith.constant 0 : i32
    return %c0_i32, %c0_i32_0 : i32, i32
  }
  func.func @transform_2(%arg0: i32, %arg1: i32) -> (i32, i32) {
    %c0_i32 = arith.constant 0 : i32
    %c0_i32_0 = arith.constant 0 : i32
    %c0_i32_1 = arith.constant 0 : i32
    return %c0_i32, %c0_i32_0 : i32, i32
  }
  func.func @transform_3(%arg0: i32, %arg1: i32) -> (i32, i32) {
    %c0_i32 = arith.constant 0 : i32
    %c0_i32_0 = arith.constant 0 : i32
    %c0_i32_1 = arith.constant 0 : i32
    return %c0_i32, %c0_i32_0 : i32, i32
  }
  func.func @transform_4(%arg0: i32, %arg1: i32) -> (i32, i32) {
    %c0_i32 = arith.constant 0 : i32
    %c0_i32_0 = arith.constant 0 : i32
    %c0_i32_1 = arith.constant 0 : i32
    return %c0_i32, %c0_i32_0 : i32, i32
  }
  func.func @transform_5(%arg0: i32, %arg1: i32) -> (i32, i32) {
    %c0_i32 = arith.constant 0 : i32
    %c0_i32_0 = arith.constant 0 : i32
    %c0_i32_1 = arith.constant 0 : i32
    return %c0_i32, %c0_i32_0 : i32, i32
  }
  func.func @transform_6(%arg0: i32, %arg1: i32) -> (i32, i32) {
    %c0_i32 = arith.constant 0 : i32
    %c0_i32_0 = arith.constant 0 : i32
    %c0_i32_1 = arith.constant 0 : i32
    return %c0_i32, %c0_i32_0 : i32, i32
  }
  func.func @transform_7(%arg0: i32, %arg1: i32) -> (i32, i32, i32) {
    %c0_i32 = arith.constant 0 : i32
    %c0_i32_0 = arith.constant 0 : i32
    return %arg0, %c0_i32, %arg1 : i32, i32, i32
  }
}

</mosaic_0001>

<llo_original>
// kernel: bottleneck_forward.1
$region0: #{bottleneck_forward.1}
  #allocation0 [shape = 'u32[]', space=smem, size = 0x4, offset = 0x4, fixed_abs, tag = 'smem constant byte address 0x4 - core index']
  #allocation1 [shape = 'u32[144,128]{1,0:T(1,128)}', space=vmem, size = 0x12000, scoped, tag = 'internal scratch']
  %s0 = inlined_call_operand.vmem [shape: bf16[2,18,24,16], index: 0, kind: input, shape index: {}]
  %s1 = inlined_call_operand.vmem [shape: bf16[16,4], index: 1, kind: input, shape index: {}]
  %s2 = inlined_call_operand.vmem [shape: f32[1,4], index: 2, kind: input, shape index: {}]
  %s3 = inlined_call_operand.vmem [shape: bf16[36,4], index: 3, kind: input, shape index: {}]
  %s4 = inlined_call_operand.vmem [shape: f32[1,4], index: 4, kind: input, shape index: {}]
  %s5 = inlined_call_operand.vmem [shape: bf16[16,20], index: 5, kind: input, shape index: {}]
  %s6 = inlined_call_operand.vmem [shape: f32[16,1], index: 6, kind: input, shape index: {}]
  %s7 = inlined_call_operand.vmem [shape: f32[2,16,256], index: 7, kind: output, shape index: {}]
  %s8 = sld [smem:[#allocation0]]
  $region95: #{bottleneck_forward.1} parent=0
    _
  %s10 = ssub.s32 1, %s8
  %s11 = scalar_select 0, %s10, %s8
  $region1: #{bottleneck_forward.1} parent=0
    #allocation2 [shape = 'u8[16384]{0}', space=vmem, size = 0x4000, scoped, tag = 'output window, operand 0']
    loop: start=0, step=1, limit=6
    $region2: #{bottleneck_forward.1} parent=1 // loop_pre_header
      _
    $region3: #{bottleneck_forward.1} parent=1 // loop_header
      %s13 = sphi 0, %s17
      %p14 = scmp.ge.s32.totalorder %s13, 6
      %s20 = sphi 0, %s32
      %s21 = sphi 0, %s28
      %s22 = sphi 0, %s20
      %s23 = sphi 0, %s21
      %s24 = sphi 0, %s22
      %s25 = sphi 0, %s23
      %s35 = sphi 0, %s37
      %s38 = sphi 0, %s35
      %s39 = sphi 0, %s38
      %s55 = sphi 0, %s39
      %s59 = sphi 0, %s59
      %s61 = sphi 0, %s59
      %s62 = sphi 0, %s61
      %s76 = sphi 0, %s62
      %s80 = sphi 0, %s80
      %s82 = sphi 0, %s80
      %s83 = sphi 0, %s82
      %s97 = sphi 0, %s83
      %s101 = sphi 0, %s101
      %s103 = sphi 0, %s101
      %s104 = sphi 0, %s103
      %s118 = sphi 0, %s104
      %s122 = sphi 0, %s122
      %s124 = sphi 0, %s122
      %s125 = sphi 0, %s124
      %s139 = sphi 0, %s125
      %s143 = sphi 0, %s143
      %s145 = sphi 0, %s143
      %s146 = sphi 0, %s145
      %s160 = sphi 0, %s146
      %s164 = sphi 0, %s164
      %s166 = sphi 0, %s164
      %s167 = sphi 0, %s166
      %s181 = sphi 0, %s167
      %s189 = sphi 0, %s191
      %s192 = sphi 0, %s189
      %s193 = sphi 0, %s192
      %s209 = sphi 0, %s193
    $region4: #{bottleneck_forward.1} parent=1 // loop_header_branch
      %16 = sbr.rel (%p14) target = $region8
    $region5: #{bottleneck_forward.1} parent=1 // loop_body
      %s18 = ssub.s32 %s13, 1
      %s19 = ssub.s32 %s13, 2
      %s26 = sadd.s32 1, %s21
      %p27 = scmp.ge.s32.totalorder %s26, 2
      %s28 = scalar_select %p27, 0, %s26
      %s29 = sadd.s32 1, %s20
      %s30 = scalar_select %p27, %s29, %s20
      %p31 = scmp.ge.s32.totalorder %s30, 2
      %s32 = scalar_select %p31, 0, %s30
      %s33 = ssub.s32 %s20, %s32
      %p34 = scmp.eq.s32.totalorder %s33, 0
      %s36 = sadd.s32 %s35, 1
      %s37 = scalar_select %p34, %s35, %s36
      %p40 = pneg %p34
      %p41 = scmp.eq.s32.totalorder %s13, 3
      %p42 = por %p40, %p41
      %p43 = scmp.ne.s32.totalorder %s35, %s38
      %p44 = scmp.eq.s32.totalorder %s13, 0
      %p45 = por %p43, %p44
      %p46 = scmp.ne.s32.totalorder %s35, %s38
      %p47 = scmp.eq.s32.totalorder %s18, 3
      %p48 = por %p46, %p47
      %p49 = scmp.ne.s32.totalorder %s38, %s39
      %p50 = scmp.eq.s32.totalorder %s18, 0
      %p51 = por %p49, %p50
      %p52 = scmp.ne.s32.totalorder %s38, %s39
      %p53 = scmp.eq.s32.totalorder %s19, 3
      %p54 = por %p52, %p53
      %p56 = scmp.ne.s32.totalorder %s39, %s55
      %p57 = scmp.eq.s32.totalorder %s19, 0
      %p58 = por %p56, %p57
      %s60 = sadd.s32 %s59, 1
      %p63 = scmp.eq.s32.totalorder %s13, 3
      %p64 = scmp.ne.s32.totalorder %s59, %s61
      %p65 = scmp.eq.s32.totalorder %s13, 0
      %p66 = por %p64, %p65
      %p67 = scmp.ne.s32.totalorder %s59, %s61
      %p68 = scmp.eq.s32.totalorder %s18, 3
      %p69 = por %p67, %p68
      %p70 = scmp.ne.s32.totalorder %s61, %s62
      %p71 = scmp.eq.s32.totalorder %s18, 0
      %p72 = por %p70, %p71
      %p73 = scmp.ne.s32.totalorder %s61, %s62
      %p74 = scmp.eq.s32.totalorder %s19, 3
      %p75 = por %p73, %p74
      %p77 = scmp.ne.s32.totalorder %s62, %s76
      %p78 = scmp.eq.s32.totalorder %s19, 0
      %p79 = por %p77, %p78
      %s81 = sadd.s32 %s80, 1
      %p84 = scmp.eq.s32.totalorder %s13, 3
      %p85 = scmp.ne.s32.totalorder %s80, %s82
      %p86 = scmp.eq.s32.totalorder %s13, 0
      %p87 = por %p85, %p86
      %p88 = scmp.ne.s32.totalorder %s80, %s82
      %p89 = scmp.eq.s32.totalorder %s18, 3
      %p90 = por %p88, %p89
      %p91 = scmp.ne.s32.totalorder %s82, %s83
      %p92 = scmp.eq.s32.totalorder %s18, 0
      %p93 = por %p91, %p92
      %p94 = scmp.ne.s32.totalorder %s82, %s83
      %p95 = scmp.eq.s32.totalorder %s19, 3
      %p96 = por %p94, %p95
      %p98 = scmp.ne.s32.totalorder %s83, %s97
      %p99 = scmp.eq.s32.totalorder %s19, 0
      %p100 = por %p98, %p99
      %s102 = sadd.s32 %s101, 1
      %p105 = scmp.eq.s32.totalorder %s13, 3
      %p106 = scmp.ne.s32.totalorder %s101, %s103
      %p107 = scmp.eq.s32.totalorder %s13, 0
      %p108 = por %p106, %p107
      %p109 = scmp.ne.s32.totalorder %s101, %s103
      %p110 = scmp.eq.s32.totalorder %s18, 3
      %p111 = por %p109, %p110
      %p112 = scmp.ne.s32.totalorder %s103, %s104
      %p113 = scmp.eq.s32.totalorder %s18, 0
      %p114 = por %p112, %p113
      %p115 = scmp.ne.s32.totalorder %s103, %s104
      %p116 = scmp.eq.s32.totalorder %s19, 3
      %p117 = por %p115, %p116
      %p119 = scmp.ne.s32.totalorder %s104, %s118
      %p120 = scmp.eq.s32.totalorder %s19, 0
      %p121 = por %p119, %p120
      %s123 = sadd.s32 %s122, 1
      %p126 = scmp.eq.s32.totalorder %s13, 3
      %p127 = scmp.ne.s32.totalorder %s122, %s124
      %p128 = scmp.eq.s32.totalorder %s13, 0
      %p129 = por %p127, %p128
      %p130 = scmp.ne.s32.totalorder %s122, %s124
      %p131 = scmp.eq.s32.totalorder %s18, 3
      %p132 = por %p130, %p131
      %p133 = scmp.ne.s32.totalorder %s124, %s125
      %p134 = scmp.eq.s32.totalorder %s18, 0
      %p135 = por %p133, %p134
      %p136 = scmp.ne.s32.totalorder %s124, %s125
      %p137 = scmp.eq.s32.totalorder %s19, 3
      %p138 = por %p136, %p137
      %p140 = scmp.ne.s32.totalorder %s125, %s139
      %p141 = scmp.eq.s32.totalorder %s19, 0
      %p142 = por %p140, %p141
      %s144 = sadd.s32 %s143, 1
      %p147 = scmp.eq.s32.totalorder %s13, 3
      %p148 = scmp.ne.s32.totalorder %s143, %s145
      %p149 = scmp.eq.s32.totalorder %s13, 0
      %p150 = por %p148, %p149
      %p151 = scmp.ne.s32.totalorder %s143, %s145
      %p152 = scmp.eq.s32.totalorder %s18, 3
      %p153 = por %p151, %p152
      %p154 = scmp.ne.s32.totalorder %s145, %s146
      %p155 = scmp.eq.s32.totalorder %s18, 0
      %p156 = por %p154, %p155
      %p157 = scmp.ne.s32.totalorder %s145, %s146
      %p158 = scmp.eq.s32.totalorder %s19, 3
      %p159 = por %p157, %p158
      %p161 = scmp.ne.s32.totalorder %s146, %s160
      %p162 = scmp.eq.s32.totalorder %s19, 0
      %p163 = por %p161, %p162
      %s165 = sadd.s32 %s164, 1
      %p168 = scmp.eq.s32.totalorder %s13, 3
      %p169 = scmp.ne.s32.totalorder %s164, %s166
      %p170 = scmp.eq.s32.totalorder %s13, 0
      %p171 = por %p169, %p170
      %p172 = scmp.ne.s32.totalorder %s164, %s166
      %p173 = scmp.eq.s32.totalorder %s18, 3
      %p174 = por %p172, %p173
      %p175 = scmp.ne.s32.totalorder %s166, %s167
      %p176 = scmp.eq.s32.totalorder %s18, 0
      %p177 = por %p175, %p176
      %p178 = scmp.ne.s32.totalorder %s166, %s167
      %p179 = scmp.eq.s32.totalorder %s19, 3
      %p180 = por %p178, %p179
      %p182 = scmp.ne.s32.totalorder %s167, %s181
      %p183 = scmp.eq.s32.totalorder %s19, 0
      %p184 = por %p182, %p183
      %s185 = ssub.s32 %s20, %s32
      %s186 = ssub.s32 %s21, %s28
      %s187 = sor.u32 %s185, %s186
      %p188 = scmp.eq.s32.totalorder %s187, 0
      %s190 = sadd.s32 %s189, 1
      %s191 = scalar_select %p188, %s189, %s190
      %p194 = pneg %p188
      %p195 = scmp.eq.s32.totalorder %s13, 3
      %p196 = por %p194, %p195
      %p197 = scmp.ne.s32.totalorder %s189, %s192
      %p198 = scmp.eq.s32.totalorder %s13, 0
      %p199 = por %p197, %p198
      %p200 = scmp.ne.s32.totalorder %s189, %s192
      %p201 = scmp.eq.s32.totalorder %s18, 3
      %p202 = por %p200, %p201
      %p203 = scmp.ne.s32.totalorder %s192, %s193
      %p204 = scmp.eq.s32.totalorder %s18, 0
      %p205 = por %p203, %p204
      %p206 = scmp.ne.s32.totalorder %s192, %s193
      %p207 = scmp.eq.s32.totalorder %s19, 3
      %p208 = por %p206, %p207
      %p210 = scmp.ne.s32.totalorder %s193, %s209
      %p211 = scmp.eq.s32.totalorder %s19, 0
      %p212 = por %p210, %p211
      %p213 = scmp.le.s32.totalorder 1, %s13
      %p214 = scmp.lt.s32.totalorder %s13, 5
      %p215 = pnand %p213, %p214
      %p216 = pneg %p215
      // Predicated region
      $region9: #{bottleneck_forward.1} parent=5 // pred_check
        _
      $region10: #{bottleneck_forward.1} parent=5 // pred_check_branch
        %218 = sbr.rel (%p215) target = $region12
      $region11: #{bottleneck_forward.1} parent=5 // pred_region
        %s219 = ssub.s32 %s13, 1
        // Predicated region
        $region13: #{bottleneck_forward.1} parent=11 // pred_check
          %p220 = pneg %p72
        $region14: #{bottleneck_forward.1} parent=11 // pred_check_branch
          %222 = sbr.rel (%p220) target = $region16
        $region15: #{bottleneck_forward.1} parent=11 // pred_region
          _
        $region16: #{bottleneck_forward.1} parent=11 // pred_fallthru
          _
        // Predicated region
        $region17: #{bottleneck_forward.1} parent=11 // pred_check
          %p223 = pneg %p93
        $region18: #{bottleneck_forward.1} parent=11 // pred_check_branch
          %225 = sbr.rel (%p223) target = $region20
        $region19: #{bottleneck_forward.1} parent=11 // pred_region
          _
        $region20: #{bottleneck_forward.1} parent=11 // pred_fallthru
          _
        // Predicated region
        $region21: #{bottleneck_forward.1} parent=11 // pred_check
          %p226 = pneg %p114
        $region22: #{bottleneck_forward.1} parent=11 // pred_check_branch
          %228 = sbr.rel (%p226) target = $region24
        $region23: #{bottleneck_forward.1} parent=11 // pred_region
          _
        $region24: #{bottleneck_forward.1} parent=11 // pred_fallthru
          _
        // Predicated region
        $region25: #{bottleneck_forward.1} parent=11 // pred_check
          %p229 = pneg %p135
        $region26: #{bottleneck_forward.1} parent=11 // pred_check_branch
          %231 = sbr.rel (%p229) target = $region28
        $region27: #{bottleneck_forward.1} parent=11 // pred_region
          _
        $region28: #{bottleneck_forward.1} parent=11 // pred_fallthru
          _
        // Predicated region
        $region29: #{bottleneck_forward.1} parent=11 // pred_check
          %p232 = pneg %p156
        $region30: #{bottleneck_forward.1} parent=11 // pred_check_branch
          %234 = sbr.rel (%p232) target = $region32
        $region31: #{bottleneck_forward.1} parent=11 // pred_region
          _
        $region32: #{bottleneck_forward.1} parent=11 // pred_fallthru
          _
        // Predicated region
        $region33: #{bottleneck_forward.1} parent=11 // pred_check
          %p235 = pneg %p177
        $region34: #{bottleneck_forward.1} parent=11 // pred_check_branch
          %237 = sbr.rel (%p235) target = $region36
        $region35: #{bottleneck_forward.1} parent=11 // pred_region
          _
        $region36: #{bottleneck_forward.1} parent=11 // pred_fallthru
          _
      $region12: #{bottleneck_forward.1} parent=5 // pred_fallthru
        _
      %p238 = scmp.lt.s32.totalorder %s13, 4
      // Predicated region
      $region37: #{bottleneck_forward.1} parent=5 // pred_check
        %p239 = pneg %p238
      $region38: #{bottleneck_forward.1} parent=5 // pred_check_branch
        %241 = sbr.rel (%p239) target = $region40
      $region39: #{bottleneck_forward.1} parent=5 // pred_region
        // Predicated region
        $region41: #{bottleneck_forward.1} parent=39 // pred_check
          %p242 = pneg %p45
        $region42: #{bottleneck_forward.1} parent=39 // pred_check_branch
          %244 = sbr.rel (%p242) target = $region44
        $region43: #{bottleneck_forward.1} parent=39 // pred_region
          %p245 = scmp.lt.s32.totalorder %s20, 1
          %s246 = scalar_select %p245, %s20, 1
          %s247 = smul.addr %s246, 54
          %s248 = smul.addr %s247, 4
          %s249 = scalar_lea.vmem %s0, %s248
        $region44: #{bottleneck_forward.1} parent=39 // pred_fallthru
          _
      $region40: #{bottleneck_forward.1} parent=5 // pred_fallthru
        _
      %p250 = scmp.le.s32.totalorder 1, %s13
      %p251 = scmp.lt.s32.totalorder %s13, 5
      %p252 = pnand %p250, %p251
      %p253 = pneg %p252
      // Predicated region
      $region45: #{bottleneck_forward.1} parent=5 // pred_check
        _
      $region46: #{bottleneck_forward.1} parent=5 // pred_check_branch
        %255 = sbr.rel (%p252) target = $region48
      $region47: #{bottleneck_forward.1} parent=5 // pred_region
        %s256 = ssub.s32 %s13, 1
        %p257 = scmp.lt.s32.totalorder %s22, 1
        %s258 = scalar_select %p257, %s22, 1
        %s259 = smul.addr %s258, 54
        %s260 = smul.addr %s259, 4
        %s261 = scalar_lea.vmem %s0, %s260
        %p262 = pneg %p51
        %p263 = pneg %p48
        %p264 = pneg %p72
        %p265 = pneg %p69
        %p266 = pneg %p93
        %p267 = pneg %p90
        %p268 = pneg %p114
        %p269 = pneg %p111
        %p270 = pneg %p135
        %p271 = pneg %p132
        %p272 = pneg %p156
        %p273 = pneg %p153
        %p274 = pneg %p177
        %p275 = pneg %p174
        %p276 = pneg %p205
        %p277 = pneg %p202
        %s278 = sand.u32 %s192, 1
        %s279 = sand.u32 %s192, 1
        %s280 = smul.addr %s279, 16
        %s281 = scalar_lea.vmem [#allocation2], %s280
        %p282 = scmp.lt.s32.totalorder %s22, 1
        %s283 = scalar_select %p282, %s22, 1
        %s284 = smul.addr %s283, 54
        %s285 = smul.addr %s284, 4
        %s286 = scalar_lea.vmem %s0, %s285
        %s288 = smul.u32 %s23, 8
        %s289 = smul.u32 %s288, 3
        %s290 = smul.addr %s289, 4
        %s291 = scalar_lea.vmem %s286, %s290
        %v292 = vld [vmem:[%s291] sm:$0xf]
        %v293 = vld [vmem:[%s291 + $0x4] sm:$0xf]
        %v294 = vld [vmem:[%s291 + $0x8] sm:$0xf]
        %v295 = vld [vmem:[%s291 + $0xc] sm:$0xf]
        %v296 = vld [vmem:[%s291 + $0x10] sm:$0xf]
        %v297 = vld [vmem:[%s291 + $0x14] sm:$0xf]
        %v298 = vld [vmem:[%s291 + $0x18] sm:$0xf]
        %v299 = vld [vmem:[%s291 + $0x1c] sm:$0xf]
        %v300 = vld [vmem:[%s291 + $0x20] sm:$0xf]
        %v301 = vld [vmem:[%s291 + $0x24] sm:$0xf]
        %v302 = vld [vmem:[%s291 + $0x28] sm:$0xf]
        %v303 = vld [vmem:[%s291 + $0x2c] sm:$0xf]
        %v304 = vld [vmem:[%s291 + $0x30] sm:$0xf]
        %v305 = vld [vmem:[%s291 + $0x34] sm:$0xf]
        %v306 = vld [vmem:[%s291 + $0x38] sm:$0xf]
        %v307 = vld [vmem:[%s291 + $0x3c] sm:$0xf]
        %v308 = vld [vmem:[%s291 + $0x40] sm:$0xf]
        %v309 = vld [vmem:[%s291 + $0x44] sm:$0xf]
        %v310 = vld [vmem:[%s291 + $0x48] sm:$0xf]
        %v311 = vld [vmem:[%s291 + $0x4c] sm:$0xf]
        %v312 = vld [vmem:[%s291 + $0x50] sm:$0xf]
        %v313 = vld [vmem:[%s291 + $0x54] sm:$0xf]
        %v314 = vld [vmem:[%s291 + $0x58] sm:$0xf]
        %v315 = vld [vmem:[%s291 + $0x5c] sm:$0xf]
        %v316 = vld [vmem:[%s291 + $0x60] sm:$0xf]
        %v317 = vld [vmem:[%s291 + $0x64] sm:$0xf]
        %v318 = vld [vmem:[%s291 + $0x68] sm:$0xf]
        %v319 = vld [vmem:[%s291 + $0x6c] sm:$0xf]
        %v320 = vld [vmem:[%s291 + $0x70] sm:$0xf]
        %v321 = vld [vmem:[%s291 + $0x74] sm:$0xf]
        %v322 = vld [vmem:[%s1] sm:$0xf]
        %v323 = vld [vmem:[%s1 + $0x4] sm:$0xf]
        %v324 = vld [vmem:[%s2] sm:$0x1]
        %v326 = vlaneseq
        %v327 = vshrl.u32 %v326, 7
        %v328 = vsub.s32 0, %v327
        %v329 = vrot.slane %v324, %v328
        %v361 = vunpack.c.l.b16 %v292
        %v362 = vunpack.c.l.b16 %v293
        %v363 = vunpack.c.l.b16 %v294
        %v364 = vunpack.c.l.b16 %v295
        %v365 = vunpack.c.l.b16 %v296
        %v366 = vunpack.c.l.b16 %v297
        %v367 = vunpack.c.l.b16 %v298
        %v368 = vunpack.c.l.b16 %v299
        %v369 = vunpack.c.l.b16 %v300
        %v370 = vunpack.c.l.b16 %v301
        %v371 = vunpack.c.l.b16 %v302
        %v372 = vunpack.c.l.b16 %v303
        %v373 = vunpack.c.l.b16 %v304
        %v374 = vunpack.c.l.b16 %v305
        %v375 = vunpack.c.l.b16 %v306
        %v376 = vunpack.c.l.b16 %v307
        %v377 = vunpack.c.l.b16 %v308
        %v378 = vunpack.c.l.b16 %v309
        %v379 = vunpack.c.l.b16 %v310
        %v380 = vunpack.c.l.b16 %v311
        %v381 = vunpack.c.l.b16 %v312
        %v382 = vunpack.c.l.b16 %v313
        %v383 = vunpack.c.l.b16 %v314
        %v384 = vunpack.c.l.b16 %v315
        %v385 = vunpack.c.l.b16 %v316
        %v386 = vunpack.c.l.b16 %v317
        %v387 = vunpack.c.l.b16 %v318
        %v388 = vunpack.c.l.b16 %v319
        %v389 = vunpack.c.l.b16 %v320
        %v390 = vunpack.c.l.b16 %v321
        %v391 = vpack.c.b16 %v362, %v361
        %v392 = vpack.c.b16 %v364, %v363
        %v393 = vpack.c.b16 %v366, %v365
        %v394 = vpack.c.b16 %v368, %v367
        %v395 = vpack.c.b16 %v370, %v369
        %v396 = vpack.c.b16 %v372, %v371
        %v397 = vpack.c.b16 %v374, %v373
        %v398 = vpack.c.b16 %v376, %v375
        %v399 = vpack.c.b16 %v378, %v377
        %v400 = vpack.c.b16 %v380, %v379
        %v401 = vpack.c.b16 %v382, %v381
        %v402 = vpack.c.b16 %v384, %v383
        %v403 = vpack.c.b16 %v386, %v385
        %v404 = vpack.c.b16 %v388, %v387
        %v405 = vpack.c.b16 %v390, %v389
        %v408 = vunpack.c.l.b16 %v322
        %v409 = vunpack.c.l.b16 %v323
        %v410 = vpack.c.b16 %v409, %v408
        %vm412 = vcmask 130048
        %v414 = vsel %vm412, %v391, 0
        %v417 = vsel %vm412, %v392, 0
        %v420 = vsel %vm412, %v393, 0
        %v423 = vsel %vm412, %v394, 0
        %v426 = vsel %vm412, %v395, 0
        %v429 = vsel %vm412, %v396, 0
        %v432 = vsel %vm412, %v397, 0
        %v435 = vsel %vm412, %v398, 0
        %v438 = vsel %vm412, %v399, 0
        %v441 = vsel %vm412, %v400, 0
        %v444 = vsel %vm412, %v401, 0
        %v447 = vsel %vm412, %v402, 0
        %v450 = vsel %vm412, %v403, 0
        %v453 = vsel %vm412, %v404, 0
        %v456 = vsel %vm412, %v405, 0
        %458 = vmatprep.subr.bf16.mxu0 0
        %459 = vmatpush1.bf16.msra.mxu0 %v410
        %460 = vmatprep.subr.bf16.mxu0 0
        %461 = vmatpush1.bf16.msra.mxu0 0
        %462 = vmatprep.subr.bf16.mxu0 0
        %463 = vmatpush1.bf16.msra.mxu0 0
        %464 = vmatprep.subr.bf16.mxu0 0
        %465 = vmatpush1.bf16.msra.mxu0 0
        %466 = vmatprep.subr.bf16.mxu0 0
        %467 = vmatpush1.bf16.msra.mxu0 0
        %468 = vmatprep.subr.bf16.mxu0 0
        %469 = vmatpush1.bf16.msra.mxu0 0
        %470 = vmatprep.subr.bf16.mxu0 0
        %471 = vmatpush1.bf16.msra.mxu0 0
        %472 = vmatprep.subr.bf16.mxu0 0
        %473 = vmatpush1.bf16.msra.mxu0 0
        %474 = vmatprep.subr.bf16.mxu0 0
        %475 = vmatpush1.bf16.msra.mxu0 0
        %476 = vmatprep.subr.bf16.mxu0 0
        %477 = vmatpush1.bf16.msra.mxu0 0
        %478 = vmatprep.subr.bf16.mxu0 0
        %479 = vmatpush1.bf16.msra.mxu0 0
        %480 = vmatprep.subr.bf16.mxu0 0
        %481 = vmatpush1.bf16.msra.mxu0 0
        %482 = vmatprep.subr.bf16.mxu0 0
        %483 = vmatpush1.bf16.msra.mxu0 0
        %484 = vmatprep.subr.bf16.mxu0 0
        %485 = vmatpush1.bf16.msra.mxu0 0
        %486 = vmatprep.subr.bf16.mxu0 0
        %487 = vmatpush1.bf16.msra.mxu0 0
        %488 = vmatprep.subr.bf16.mxu0 0
        %489 = vmatpush1.bf16.msra.mxu0 0
        %490 = vmatprep.mubr.bf16.mxu0 0
        %491 = vmatmul.mubr.bf16.gmra.mrb[0].mxu0 %v414
        %v492 = vpop.f32.mrb[0].mxu0
        %v493 = vadd.f32 %v329, %v492
        %v494 = vpop.f32.mrb[0].mxu0
        %v495 = vpop.f32.mrb[0].mxu0
        %v496 = vadd.f32 %v329, %v495
        %v497 = vpop.f32.mrb[0].mxu0
        %498 = vmatprep.mubr.bf16.mxu0 0
        %499 = vmatmul.mubr.bf16.gmra.mrb[0].mxu0 %v417
        %v500 = vpop.f32.mrb[0].mxu0
        %v501 = vadd.f32 %v329, %v500
        %v502 = vpop.f32.mrb[0].mxu0
        %v503 = vpop.f32.mrb[0].mxu0
        %v504 = vadd.f32 %v329, %v503
        %v505 = vpop.f32.mrb[0].mxu0
        %506 = vmatprep.mubr.bf16.mxu0 0
        %507 = vmatmul.mubr.bf16.gmra.mrb[0].mxu0 %v420
        %v508 = vpop.f32.mrb[0].mxu0
        %v509 = vadd.f32 %v329, %v508
        %v510 = vpop.f32.mrb[0].mxu0
        %v511 = vpop.f32.mrb[0].mxu0
        %v512 = vadd.f32 %v329, %v511
        %v513 = vpop.f32.mrb[0].mxu0
        %514 = vmatprep.mubr.bf16.mxu0 0
        %515 = vmatmul.mubr.bf16.gmra.mrb[0].mxu0 %v423
        %v516 = vpop.f32.mrb[0].mxu0
        %v517 = vadd.f32 %v329, %v516
        %v518 = vpop.f32.mrb[0].mxu0
        %v519 = vpop.f32.mrb[0].mxu0
        %v520 = vadd.f32 %v329, %v519
        %v521 = vpop.f32.mrb[0].mxu0
        %522 = vmatprep.mubr.bf16.mxu0 0
        %523 = vmatmul.mubr.bf16.gmra.mrb[0].mxu0 %v426
        %v524 = vpop.f32.mrb[0].mxu0
        %v525 = vadd.f32 %v329, %v524
        %v526 = vpop.f32.mrb[0].mxu0
        %v527 = vpop.f32.mrb[0].mxu0
        %v528 = vadd.f32 %v329, %v527
        %v529 = vpop.f32.mrb[0].mxu0
        %530 = vmatprep.mubr.bf16.mxu0 0
        %531 = vmatmul.mubr.bf16.gmra.mrb[0].mxu0 %v429
        %v532 = vpop.f32.mrb[0].mxu0
        %v533 = vadd.f32 %v329, %v532
        %v534 = vpop.f32.mrb[0].mxu0
        %v535 = vpop.f32.mrb[0].mxu0
        %v536 = vadd.f32 %v329, %v535
        %v537 = vpop.f32.mrb[0].mxu0
        %538 = vmatprep.mubr.bf16.mxu0 0
        %539 = vmatmul.mubr.bf16.gmra.mrb[0].mxu0 %v432
        %v540 = vpop.f32.mrb[0].mxu0
        %v541 = vadd.f32 %v329, %v540
        %v542 = vpop.f32.mrb[0].mxu0
        %v543 = vpop.f32.mrb[0].mxu0
        %v544 = vadd.f32 %v329, %v543
        %v545 = vpop.f32.mrb[0].mxu0
        %546 = vmatprep.mubr.bf16.mxu0 0
        %547 = vmatmul.mubr.bf16.gmra.mrb[0].mxu0 %v435
        %v548 = vpop.f32.mrb[0].mxu0
        %v549 = vadd.f32 %v329, %v548
        %v550 = vpop.f32.mrb[0].mxu0
        %v551 = vpop.f32.mrb[0].mxu0
        %v552 = vadd.f32 %v329, %v551
        %v553 = vpop.f32.mrb[0].mxu0
        %554 = vmatprep.mubr.bf16.mxu0 0
        %555 = vmatmul.mubr.bf16.gmra.mrb[0].mxu0 %v438
        %v556 = vpop.f32.mrb[0].mxu0
        %v557 = vadd.f32 %v329, %v556
        %v558 = vpop.f32.mrb[0].mxu0
        %v559 = vpop.f32.mrb[0].mxu0
        %v560 = vadd.f32 %v329, %v559
        %v561 = vpop.f32.mrb[0].mxu0
        %562 = vmatprep.mubr.bf16.mxu0 0
        %563 = vmatmul.mubr.bf16.gmra.mrb[0].mxu0 %v441
        %v564 = vpop.f32.mrb[0].mxu0
        %v565 = vadd.f32 %v329, %v564
        %v566 = vpop.f32.mrb[0].mxu0
        %v567 = vpop.f32.mrb[0].mxu0
        %v568 = vadd.f32 %v329, %v567
        %v569 = vpop.f32.mrb[0].mxu0
        %570 = vmatprep.mubr.bf16.mxu0 0
        %571 = vmatmul.mubr.bf16.gmra.mrb[0].mxu0 %v444
        %v572 = vpop.f32.mrb[0].mxu0
        %v573 = vadd.f32 %v329, %v572
        %v574 = vpop.f32.mrb[0].mxu0
        %v575 = vpop.f32.mrb[0].mxu0
        %v576 = vadd.f32 %v329, %v575
        %v577 = vpop.f32.mrb[0].mxu0
        %578 = vmatprep.mubr.bf16.mxu0 0
        %579 = vmatmul.mubr.bf16.gmra.mrb[0].mxu0 %v447
        %v580 = vpop.f32.mrb[0].mxu0
        %v581 = vadd.f32 %v329, %v580
        %v582 = vpop.f32.mrb[0].mxu0
        %v583 = vpop.f32.mrb[0].mxu0
        %v584 = vadd.f32 %v329, %v583
        %v585 = vpop.f32.mrb[0].mxu0
        %586 = vmatprep.mubr.bf16.mxu0 0
        %587 = vmatmul.mubr.bf16.gmra.mrb[0].mxu0 %v450
        %v588 = vpop.f32.mrb[0].mxu0
        %v589 = vadd.f32 %v329, %v588
        %v590 = vpop.f32.mrb[0].mxu0
        %v591 = vpop.f32.mrb[0].mxu0
        %v592 = vadd.f32 %v329, %v591
        %v593 = vpop.f32.mrb[0].mxu0
        %594 = vmatprep.mubr.bf16.mxu0 0
        %595 = vmatmul.mubr.bf16.gmra.mrb[0].mxu0 %v453
        %v596 = vpop.f32.mrb[0].mxu0
        %v597 = vadd.f32 %v329, %v596
        %v598 = vpop.f32.mrb[0].mxu0
        %v599 = vpop.f32.mrb[0].mxu0
        %v600 = vadd.f32 %v329, %v599
        %v601 = vpop.f32.mrb[0].mxu0
        %602 = vmatprep.mubr.bf16.mxu0 0
        %603 = vmatmul.mubr.bf16.gmra.mrb[0].mxu0 %v456
        %v604 = vpop.f32.mrb[0].mxu0
        %v605 = vadd.f32 %v329, %v604
        %v606 = vpop.f32.mrb[0].mxu0
        %v607 = vpop.f32.mrb[0].mxu0
        %v608 = vadd.f32 %v329, %v607
        %v609 = vpop.f32.mrb[0].mxu0
        %610 = vdwg.mxu0
        %v611 = vmax.f32 %v493, 0.0
        %v612 = vmax.f32 %v496, 0.0
        %v613 = vmax.f32 %v501, 0.0
        %v614 = vmax.f32 %v504, 0.0
        %v615 = vmax.f32 %v509, 0.0
        %v616 = vmax.f32 %v512, 0.0
        %v617 = vmax.f32 %v517, 0.0
        %v618 = vmax.f32 %v520, 0.0
        %v619 = vmax.f32 %v525, 0.0
        %v620 = vmax.f32 %v528, 0.0
        %v621 = vmax.f32 %v533, 0.0
        %v622 = vmax.f32 %v536, 0.0
        %v623 = vmax.f32 %v541, 0.0
        %v624 = vmax.f32 %v544, 0.0
        %v625 = vmax.f32 %v549, 0.0
        %v626 = vmax.f32 %v552, 0.0
        %v627 = vmax.f32 %v557, 0.0
        %v628 = vmax.f32 %v560, 0.0
        %v629 = vmax.f32 %v565, 0.0
        %v630 = vmax.f32 %v568, 0.0
        %v631 = vmax.f32 %v573, 0.0
        %v632 = vmax.f32 %v576, 0.0
        %v633 = vmax.f32 %v581, 0.0
        %v634 = vmax.f32 %v584, 0.0
        %v635 = vmax.f32 %v589, 0.0
        %v636 = vmax.f32 %v592, 0.0
        %v637 = vmax.f32 %v597, 0.0
        %v638 = vmax.f32 %v600, 0.0
        %v639 = vmax.f32 %v605, 0.0
        %v640 = vmax.f32 %v608, 0.0
        %v641 = vlaneseq
        %v642 = vshrl.u32 %v641, 7
        %v643 = vadd.s32 %v642, 8
        %v644 = vadd.s32 %v642, 16
        %v645 = vstv %s288
        %v646 = vadd.s32 %v645, 1
        %v647 = vadd.s32 %v645, 2
        %v648 = vadd.s32 %v645, 3
        %v649 = vadd.s32 %v645, 4
        %v650 = vadd.s32 %v645, 5
        %v651 = vadd.s32 %v645, 6
        %v652 = vadd.s32 %v645, 7
        %v653 = vadd.s32 %v645, 8
        %v654 = vadd.s32 %v645, 9
        %vm655 = vcmp.ge.s32.totalorder %v645, 1
        %vm656 = vcmp.ge.s32.totalorder %v646, 1
        %vm657 = vcmp.ge.s32.totalorder %v647, 1
        %vm658 = vcmp.ge.s32.totalorder %v648, 1
        %vm659 = vcmp.ge.s32.totalorder %v649, 1
        %vm660 = vcmp.ge.s32.totalorder %v650, 1
        %vm661 = vcmp.ge.s32.totalorder %v651, 1
        %vm662 = vcmp.ge.s32.totalorder %v652, 1
        %vm663 = vcmp.ge.s32.totalorder %v653, 1
        %vm664 = vcmp.ge.s32.totalorder %v654, 1
        %vm665 = vcmp.le.s32.totalorder %v645, 16
        %vm666 = vcmp.le.s32.totalorder %v646, 16
        %vm667 = vcmp.le.s32.totalorder %v647, 16
        %vm668 = vcmp.le.s32.totalorder %v648, 16
        %vm669 = vcmp.le.s32.totalorder %v649, 16
        %vm670 = vcmp.le.s32.totalorder %v650, 16
        %vm671 = vcmp.le.s32.totalorder %v651, 16
        %vm672 = vcmp.le.s32.totalorder %v652, 16
        %vm673 = vcmp.le.s32.totalorder %v653, 16
        %vm674 = vcmp.le.s32.totalorder %v654, 16
        %vm675 = vmand %vm655, %vm665
        %vm676 = vmand %vm656, %vm666
        %vm677 = vmand %vm657, %vm667
        %vm678 = vmand %vm658, %vm668
        %vm679 = vmand %vm659, %vm669
        %vm680 = vmand %vm660, %vm670
        %vm681 = vmand %vm661, %vm671
        %vm682 = vmand %vm662, %vm672
        %vm683 = vmand %vm663, %vm673
        %vm684 = vmand %vm664, %vm674
        %vm685 = vcmp.ge.s32.totalorder %v642, 1
        %vm686 = vcmp.ge.s32.totalorder %v643, 1
        %vm687 = vcmp.ge.s32.totalorder %v644, 1
        %vm688 = vmand %vm675, %vm685
        %vm689 = vmand %vm675, %vm686
        %vm690 = vmand %vm675, %vm687
        %vm691 = vmand %vm676, %vm685
        %vm692 = vmand %vm676, %vm686
        %vm693 = vmand %vm676, %vm687
        %vm694 = vmand %vm677, %vm685
        %vm695 = vmand %vm677, %vm686
        %vm696 = vmand %vm677, %vm687
        %vm697 = vmand %vm678, %vm685
        %vm698 = vmand %vm678, %vm686
        %vm699 = vmand %vm678, %vm687
        %vm700 = vmand %vm679, %vm685
        %vm701 = vmand %vm679, %vm686
        %vm702 = vmand %vm679, %vm687
        %vm703 = vmand %vm680, %vm685
        %vm704 = vmand %vm680, %vm686
        %vm705 = vmand %vm680, %vm687
        %vm706 = vmand %vm681, %vm685
        %vm707 = vmand %vm681, %vm686
        %vm708 = vmand %vm681, %vm687
        %vm709 = vmand %vm682, %vm685
        %vm710 = vmand %vm682, %vm686
        %vm711 = vmand %vm682, %vm687
        %vm712 = vmand %vm683, %vm685
        %vm713 = vmand %vm683, %vm686
        %vm714 = vmand %vm683, %vm687
        %vm715 = vmand %vm684, %vm685
        %vm716 = vmand %vm684, %vm686
        %vm717 = vmand %vm684, %vm687
        %vm718 = vcmp.le.s32.totalorder %v642, 16
        %vm719 = vcmp.le.s32.totalorder %v643, 16
        %vm720 = vcmp.le.s32.totalorder %v644, 16
        %vm721 = vmand %vm688, %vm718
        %vm722 = vmand %vm689, %vm719
        %vm723 = vmand %vm690, %vm720
        %vm724 = vmand %vm691, %vm718
        %vm725 = vmand %vm692, %vm719
        %vm726 = vmand %vm693, %vm720
        %vm727 = vmand %vm694, %vm718
        %vm728 = vmand %vm695, %vm719
        %vm729 = vmand %vm696, %vm720
        %vm730 = vmand %vm697, %vm718
        %vm731 = vmand %vm698, %vm719
        %vm732 = vmand %vm699, %vm720
        %vm733 = vmand %vm700, %vm718
        %vm734 = vmand %vm701, %vm719
        %vm735 = vmand %vm702, %vm720
        %vm736 = vmand %vm703, %vm718
        %vm737 = vmand %vm704, %vm719
        %vm738 = vmand %vm705, %vm720
        %vm739 = vmand %vm706, %vm718
        %vm740 = vmand %vm707, %vm719
        %vm741 = vmand %vm708, %vm720
        %vm742 = vmand %vm709, %vm718
        %vm743 = vmand %vm710, %vm719
        %vm744 = vmand %vm711, %vm720
        %vm745 = vmand %vm712, %vm718
        %vm746 = vmand %vm713, %vm719
        %vm747 = vmand %vm714, %vm720
        %vm748 = vmand %vm715, %vm718
        %vm749 = vmand %vm716, %vm719
        %vm750 = vmand %vm717, %vm720
        %v751 = vsel %vm721, 1, 0
        %v752 = vsel %vm722, 1, 0
        %v753 = vsel %vm723, 1, 0
        %v754 = vsel %vm724, 1, 0
        %v755 = vsel %vm725, 1, 0
        %v756 = vsel %vm726, 1, 0
        %v757 = vsel %vm727, 1, 0
        %v758 = vsel %vm728, 1, 0
        %v759 = vsel %vm729, 1, 0
        %v760 = vsel %vm730, 1, 0
        %v761 = vsel %vm731, 1, 0
        %v762 = vsel %vm732, 1, 0
        %v763 = vsel %vm733, 1, 0
        %v764 = vsel %vm734, 1, 0
        %v765 = vsel %vm735, 1, 0
        %v766 = vsel %vm736, 1, 0
        %v767 = vsel %vm737, 1, 0
        %v768 = vsel %vm738, 1, 0
        %v769 = vsel %vm739, 1, 0
        %v770 = vsel %vm740, 1, 0
        %v771 = vsel %vm741, 1, 0
        %v772 = vsel %vm742, 1, 0
        %v773 = vsel %vm743, 1, 0
        %v774 = vsel %vm744, 1, 0
        %v775 = vsel %vm745, 1, 0
        %v776 = vsel %vm746, 1, 0
        %v777 = vsel %vm747, 1, 0
        %v778 = vsel %vm748, 1, 0
        %v779 = vsel %vm749, 1, 0
        %v780 = vsel %vm750, 1, 0
        %vm781 = vcmp.eq.s32.totalorder %v751, 1
        %vm782 = vcmp.eq.s32.totalorder %v752, 1
        %vm783 = vcmp.eq.s32.totalorder %v753, 1
        %vm784 = vcmp.eq.s32.totalorder %v754, 1
        %vm785 = vcmp.eq.s32.totalorder %v755, 1
        %vm786 = vcmp.eq.s32.totalorder %v756, 1
        %vm787 = vcmp.eq.s32.totalorder %v757, 1
        %vm788 = vcmp.eq.s32.totalorder %v758, 1
        %vm789 = vcmp.eq.s32.totalorder %v759, 1
        %vm790 = vcmp.eq.s32.totalorder %v760, 1
        %vm791 = vcmp.eq.s32.totalorder %v761, 1
        %vm792 = vcmp.eq.s32.totalorder %v762, 1
        %vm793 = vcmp.eq.s32.totalorder %v763, 1
        %vm794 = vcmp.eq.s32.totalorder %v764, 1
        %vm795 = vcmp.eq.s32.totalorder %v765, 1
        %vm796 = vcmp.eq.s32.totalorder %v766, 1
        %vm797 = vcmp.eq.s32.totalorder %v767, 1
        %vm798 = vcmp.eq.s32.totalorder %v768, 1
        %vm799 = vcmp.eq.s32.totalorder %v769, 1
        %vm800 = vcmp.eq.s32.totalorder %v770, 1
        %vm801 = vcmp.eq.s32.totalorder %v771, 1
        %vm802 = vcmp.eq.s32.totalorder %v772, 1
        %vm803 = vcmp.eq.s32.totalorder %v773, 1
        %vm804 = vcmp.eq.s32.totalorder %v774, 1
        %vm805 = vcmp.eq.s32.totalorder %v775, 1
        %vm806 = vcmp.eq.s32.totalorder %v776, 1
        %vm807 = vcmp.eq.s32.totalorder %v777, 1
        %vm808 = vcmp.eq.s32.totalorder %v778, 1
        %vm809 = vcmp.eq.s32.totalorder %v779, 1
        %vm810 = vcmp.eq.s32.totalorder %v780, 1
        %v811 = vsel %vm781, %v611, 0.0
        %v812 = vsel %vm782, %v612, 0.0
        %v813 = vsel %vm783, %v613, 0.0
        %v814 = vsel %vm784, %v614, 0.0
        %v815 = vsel %vm785, %v615, 0.0
        %v816 = vsel %vm786, %v616, 0.0
        %v817 = vsel %vm787, %v617, 0.0
        %v818 = vsel %vm788, %v618, 0.0
        %v819 = vsel %vm789, %v619, 0.0
        %v820 = vsel %vm790, %v620, 0.0
        %v821 = vsel %vm791, %v621, 0.0
        %v822 = vsel %vm792, %v622, 0.0
        %v823 = vsel %vm793, %v623, 0.0
        %v824 = vsel %vm794, %v624, 0.0
        %v825 = vsel %vm795, %v625, 0.0
        %v826 = vsel %vm796, %v626, 0.0
        %v827 = vsel %vm797, %v627, 0.0
        %v828 = vsel %vm798, %v628, 0.0
        %v829 = vsel %vm799, %v629, 0.0
        %v830 = vsel %vm800, %v630, 0.0
        %v831 = vsel %vm801, %v631, 0.0
        %v832 = vsel %vm802, %v632, 0.0
        %v833 = vsel %vm803, %v633, 0.0
        %v834 = vsel %vm804, %v634, 0.0
        %v835 = vsel %vm805, %v635, 0.0
        %v836 = vsel %vm806, %v636, 0.0
        %v837 = vsel %vm807, %v637, 0.0
        %v838 = vsel %vm808, %v638, 0.0
        %v839 = vsel %vm809, %v639, 0.0
        %v840 = vsel %vm810, %v640, 0.0
        %v841 = vpack.c.bf16 %v812, %v811
        %v842 = vpack.c.bf16 %v813, %v813
        %v843 = vpack.c.bf16 %v815, %v814
        %v844 = vpack.c.bf16 %v816, %v816
        %v845 = vpack.c.bf16 %v818, %v817
        %v846 = vpack.c.bf16 %v819, %v819
        %v847 = vpack.c.bf16 %v821, %v820
        %v848 = vpack.c.bf16 %v822, %v822
        %v849 = vpack.c.bf16 %v824, %v823
        %v850 = vpack.c.bf16 %v825, %v825
        %v851 = vpack.c.bf16 %v827, %v826
        %v852 = vpack.c.bf16 %v828, %v828
        %v853 = vpack.c.bf16 %v830, %v829
        %v854 = vpack.c.bf16 %v831, %v831
        %v855 = vpack.c.bf16 %v833, %v832
        %v856 = vpack.c.bf16 %v834, %v834
        %v857 = vpack.c.bf16 %v836, %v835
        %v858 = vpack.c.bf16 %v837, %v837
        %v859 = vpack.c.bf16 %v839, %v838
        %v860 = vpack.c.bf16 %v840, %v840
        %vm861 = vsmask.f32 7424
        %v863 = vshrl.u32 %v841, 16
        %v865 = vshll.u32 %v841, 16
        %v867 = vrot.slane %v865, 1
        %v868 = vor.u32 %v863, %v867
        %v870 = vshll.u32 %v842, 16
        %v872 = vrot.slane %v870, 1
        %v873 = vsel %vm861, %v868, %v872
        %v875 = vshrl.u32 %v843, 16
        %v877 = vshll.u32 %v843, 16
        %v879 = vrot.slane %v877, 1
        %v880 = vor.u32 %v875, %v879
        %v882 = vshll.u32 %v844, 16
        %v884 = vrot.slane %v882, 1
        %v885 = vsel %vm861, %v880, %v884
        %v887 = vshrl.u32 %v845, 16
        %v889 = vshll.u32 %v845, 16
        %v891 = vrot.slane %v889, 1
        %v892 = vor.u32 %v887, %v891
        %v894 = vshll.u32 %v846, 16
        %v896 = vrot.slane %v894, 1
        %v897 = vsel %vm861, %v892, %v896
        %v899 = vshrl.u32 %v847, 16
        %v901 = vshll.u32 %v847, 16
        %v903 = vrot.slane %v901, 1
        %v904 = vor.u32 %v899, %v903
        %v906 = vshll.u32 %v848, 16
        %v908 = vrot.slane %v906, 1
        %v909 = vsel %vm861, %v904, %v908
        %v911 = vshrl.u32 %v849, 16
        %v913 = vshll.u32 %v849, 16
        %v915 = vrot.slane %v913, 1
        %v916 = vor.u32 %v911, %v915
        %v918 = vshll.u32 %v850, 16
        %v920 = vrot.slane %v918, 1
        %v921 = vsel %vm861, %v916, %v920
        %v923 = vshrl.u32 %v851, 16
        %v925 = vshll.u32 %v851, 16
        %v927 = vrot.slane %v925, 1
        %v928 = vor.u32 %v923, %v927
        %v930 = vshll.u32 %v852, 16
        %v932 = vrot.slane %v930, 1
        %v933 = vsel %vm861, %v928, %v932
        %v935 = vshrl.u32 %v853, 16
        %v937 = vshll.u32 %v853, 16
        %v939 = vrot.slane %v937, 1
        %v940 = vor.u32 %v935, %v939
        %v942 = vshll.u32 %v854, 16
        %v944 = vrot.slane %v942, 1
        %v945 = vsel %vm861, %v940, %v944
        %v947 = vshrl.u32 %v855, 16
        %v949 = vshll.u32 %v855, 16
        %v951 = vrot.slane %v949, 1
        %v952 = vor.u32 %v947, %v951
        %v954 = vshll.u32 %v856, 16
        %v956 = vrot.slane %v954, 1
        %v957 = vsel %vm861, %v952, %v956
        %958 = vrot.lane.b32.xlu0 %v873, 4
        %v959 = vpop.permute.xlu0 %958
        %960 = vrot.lane.b32.xlu0 %v885, 4
        %v961 = vpop.permute.xlu0 %960
        %962 = vrot.lane.b32.xlu0 %v897, 4
        %v963 = vpop.permute.xlu0 %962
        %964 = vrot.lane.b32.xlu0 %v909, 4
        %v965 = vpop.permute.xlu0 %964
        %966 = vrot.lane.b32.xlu0 %v921, 4
        %v967 = vpop.permute.xlu0 %966
        %968 = vrot.lane.b32.xlu0 %v933, 4
        %v969 = vpop.permute.xlu0 %968
        %970 = vrot.lane.b32.xlu0 %v945, 4
        %v971 = vpop.permute.xlu0 %970
        %972 = vrot.lane.b32.xlu0 %v957, 4
        %v973 = vpop.permute.xlu0 %972
        %vm990 = vcmask 1046528
        %v991 = vrot.slane %v841, 1
        %v992 = vrot.slane %v842, 1
        %v993 = vsel %vm990, %v991, %v992
        %v994 = vrot.slane %v843, 1
        %v995 = vrot.slane %v844, 1
        %v996 = vsel %vm990, %v994, %v995
        %v997 = vrot.slane %v845, 1
        %v998 = vrot.slane %v846, 1
        %v999 = vsel %vm990, %v997, %v998
        %v1000 = vrot.slane %v847, 1
        %v1001 = vrot.slane %v848, 1
        %v1002 = vsel %vm990, %v1000, %v1001
        %v1003 = vrot.slane %v849, 1
        %v1004 = vrot.slane %v850, 1
        %v1005 = vsel %vm990, %v1003, %v1004
        %v1006 = vrot.slane %v851, 1
        %v1007 = vrot.slane %v852, 1
        %v1008 = vsel %vm990, %v1006, %v1007
        %v1009 = vrot.slane %v853, 1
        %v1010 = vrot.slane %v854, 1
        %v1011 = vsel %vm990, %v1009, %v1010
        %v1012 = vrot.slane %v855, 1
        %v1013 = vrot.slane %v856, 1
        %v1014 = vsel %vm990, %v1012, %v1013
        %1015 = vrot.lane.b32.xlu0 %v993, 8
        %v1016 = vpop.permute.xlu0 %1015
        %1017 = vrot.lane.b32.xlu0 %v996, 8
        %v1018 = vpop.permute.xlu0 %1017
        %1019 = vrot.lane.b32.xlu0 %v999, 8
        %v1020 = vpop.permute.xlu0 %1019
        %1021 = vrot.lane.b32.xlu0 %v1002, 8
        %v1022 = vpop.permute.xlu0 %1021
        %1023 = vrot.lane.b32.xlu0 %v1005, 8
        %v1024 = vpop.permute.xlu0 %1023
        %1025 = vrot.lane.b32.xlu0 %v1008, 8
        %v1026 = vpop.permute.xlu0 %1025
        %1027 = vrot.lane.b32.xlu0 %v1011, 8
        %v1028 = vpop.permute.xlu0 %1027
        %1029 = vrot.lane.b32.xlu0 %v1014, 8
        %v1030 = vpop.permute.xlu0 %1029
        %1032 = vrot.lane.b32.xlu0 %v843, 12
        %v1033 = vpop.permute.xlu0 %1032
        %1034 = vrot.lane.b32.xlu0 %v845, 12
        %v1035 = vpop.permute.xlu0 %1034
        %1036 = vrot.lane.b32.xlu0 %v847, 12
        %v1037 = vpop.permute.xlu0 %1036
        %1038 = vrot.lane.b32.xlu0 %v849, 12
        %v1039 = vpop.permute.xlu0 %1038
        %1040 = vrot.lane.b32.xlu0 %v851, 12
        %v1041 = vpop.permute.xlu0 %1040
        %1042 = vrot.lane.b32.xlu0 %v853, 12
        %v1043 = vpop.permute.xlu0 %1042
        %1044 = vrot.lane.b32.xlu0 %v855, 12
        %v1045 = vpop.permute.xlu0 %1044
        %1046 = vrot.lane.b32.xlu0 %v857, 12
        %v1047 = vpop.permute.xlu0 %1046
        %v1049 = vshrl.u32 %v857, 16
        %v1051 = vshll.u32 %v857, 16
        %v1053 = vrot.slane %v1051, 1
        %v1054 = vor.u32 %v1049, %v1053
        %v1056 = vshll.u32 %v858, 16
        %v1058 = vrot.slane %v1056, 1
        %v1059 = vsel %vm861, %v1054, %v1058
        %1060 = vrot.lane.b32.xlu0 %v885, 16
        %v1061 = vpop.permute.xlu0 %1060
        %1062 = vrot.lane.b32.xlu0 %v897, 16
        %v1063 = vpop.permute.xlu0 %1062
        %1064 = vrot.lane.b32.xlu0 %v909, 16
        %v1065 = vpop.permute.xlu0 %1064
        %1066 = vrot.lane.b32.xlu0 %v921, 16
        %v1067 = vpop.permute.xlu0 %1066
        %1068 = vrot.lane.b32.xlu0 %v933, 16
        %v1069 = vpop.permute.xlu0 %1068
        %1070 = vrot.lane.b32.xlu0 %v945, 16
        %v1071 = vpop.permute.xlu0 %1070
        %1072 = vrot.lane.b32.xlu0 %v957, 16
        %v1073 = vpop.permute.xlu0 %1072
        %1074 = vrot.lane.b32.xlu0 %v1059, 16
        %v1075 = vpop.permute.xlu0 %1074
        %v1077 = vrot.slane %v857, 1
        %v1078 = vrot.slane %v858, 1
        %v1079 = vsel %vm990, %v1077, %v1078
        %1080 = vrot.lane.b32.xlu0 %v996, 20
        %v1081 = vpop.permute.xlu0 %1080
        %1082 = vrot.lane.b32.xlu0 %v999, 20
        %v1083 = vpop.permute.xlu0 %1082
        %1084 = vrot.lane.b32.xlu0 %v1002, 20
        %v1085 = vpop.permute.xlu0 %1084
        %1086 = vrot.lane.b32.xlu0 %v1005, 20
        %v1087 = vpop.permute.xlu0 %1086
        %1088 = vrot.lane.b32.xlu0 %v1008, 20
        %v1089 = vpop.permute.xlu0 %1088
        %1090 = vrot.lane.b32.xlu0 %v1011, 20
        %v1091 = vpop.permute.xlu0 %1090
        %1092 = vrot.lane.b32.xlu0 %v1014, 20
        %v1093 = vpop.permute.xlu0 %1092
        %1094 = vrot.lane.b32.xlu0 %v1079, 20
        %v1095 = vpop.permute.xlu0 %1094
        %1097 = vrot.lane.b32.xlu0 %v845, 24
        %v1098 = vpop.permute.xlu0 %1097
        %1099 = vrot.lane.b32.xlu0 %v847, 24
        %v1100 = vpop.permute.xlu0 %1099
        %1101 = vrot.lane.b32.xlu0 %v849, 24
        %v1102 = vpop.permute.xlu0 %1101
        %1103 = vrot.lane.b32.xlu0 %v851, 24
        %v1104 = vpop.permute.xlu0 %1103
        %1105 = vrot.lane.b32.xlu0 %v853, 24
        %v1106 = vpop.permute.xlu0 %1105
        %1107 = vrot.lane.b32.xlu0 %v855, 24
        %v1108 = vpop.permute.xlu0 %1107
        %1109 = vrot.lane.b32.xlu0 %v857, 24
        %v1110 = vpop.permute.xlu0 %1109
        %1111 = vrot.lane.b32.xlu0 %v859, 24
        %v1112 = vpop.permute.xlu0 %1111
        %v1114 = vshrl.u32 %v859, 16
        %v1116 = vshll.u32 %v859, 16
        %v1118 = vrot.slane %v1116, 1
        %v1119 = vor.u32 %v1114, %v1118
        %v1121 = vshll.u32 %v860, 16
        %v1123 = vrot.slane %v1121, 1
        %v1124 = vsel %vm861, %v1119, %v1123
        %1125 = vrot.lane.b32.xlu0 %v897, 28
        %v1126 = vpop.permute.xlu0 %1125
        %1127 = vrot.lane.b32.xlu0 %v909, 28
        %v1128 = vpop.permute.xlu0 %1127
        %1129 = vrot.lane.b32.xlu0 %v921, 28
        %v1130 = vpop.permute.xlu0 %1129
        %1131 = vrot.lane.b32.xlu0 %v933, 28
        %v1132 = vpop.permute.xlu0 %1131
        %1133 = vrot.lane.b32.xlu0 %v945, 28
        %v1134 = vpop.permute.xlu0 %1133
        %1135 = vrot.lane.b32.xlu0 %v957, 28
        %v1136 = vpop.permute.xlu0 %1135
        %1137 = vrot.lane.b32.xlu0 %v1059, 28
        %v1138 = vpop.permute.xlu0 %1137
        %1139 = vrot.lane.b32.xlu0 %v1124, 28
        %v1140 = vpop.permute.xlu0 %1139
        %v1142 = vrot.slane %v859, 1
        %v1143 = vrot.slane %v860, 1
        %v1144 = vsel %vm990, %v1142, %v1143
        %1145 = vrot.lane.b32.xlu0 %v999, 32
        %v1146 = vpop.permute.xlu0 %1145
        %1147 = vrot.lane.b32.xlu0 %v1002, 32
        %v1148 = vpop.permute.xlu0 %1147
        %1149 = vrot.lane.b32.xlu0 %v1005, 32
        %v1150 = vpop.permute.xlu0 %1149
        %1151 = vrot.lane.b32.xlu0 %v1008, 32
        %v1152 = vpop.permute.xlu0 %1151
        %1153 = vrot.lane.b32.xlu0 %v1011, 32
        %v1154 = vpop.permute.xlu0 %1153
        %1155 = vrot.lane.b32.xlu0 %v1014, 32
        %v1156 = vpop.permute.xlu0 %1155
        %1157 = vrot.lane.b32.xlu0 %v1079, 32
        %v1158 = vpop.permute.xlu0 %1157
        %1159 = vrot.lane.b32.xlu0 %v1144, 32
        %v1160 = vpop.permute.xlu0 %1159
        %vm1161 = vcmask 31744
        %v1163 = vsel %vm1161, %v841, %v959
        %v1165 = vsel %vm1161, %v843, %v961
        %v1167 = vsel %vm1161, %v845, %v963
        %v1169 = vsel %vm1161, %v847, %v965
        %v1171 = vsel %vm1161, %v849, %v967
        %v1173 = vsel %vm1161, %v851, %v969
        %v1175 = vsel %vm1161, %v853, %v971
        %v1177 = vsel %vm1161, %v855, %v973
        %vm1178 = vcmask 64512
        %v1180 = vsel %vm1178, %v1163, %v1016
        %v1182 = vsel %vm1178, %v1165, %v1018
        %v1184 = vsel %vm1178, %v1167, %v1020
        %v1186 = vsel %vm1178, %v1169, %v1022
        %v1188 = vsel %vm1178, %v1171, %v1024
        %v1190 = vsel %vm1178, %v1173, %v1026
        %v1192 = vsel %vm1178, %v1175, %v1028
        %v1194 = vsel %vm1178, %v1177, %v1030
        %vm1195 = vcmask 97280
        %v1197 = vsel %vm1195, %v1180, %v1033
        %v1199 = vsel %vm1195, %v1182, %v1035
        %v1201 = vsel %vm1195, %v1184, %v1037
        %v1203 = vsel %vm1195, %v1186, %v1039
        %v1205 = vsel %vm1195, %v1188, %v1041
        %v1207 = vsel %vm1195, %v1190, %v1043
        %v1209 = vsel %vm1195, %v1192, %v1045
        %v1211 = vsel %vm1195, %v1194, %v1047
        %v1213 = vsel %vm412, %v1197, %v1061
        %v1215 = vsel %vm412, %v1199, %v1063
        %v1217 = vsel %vm412, %v1201, %v1065
        %v1219 = vsel %vm412, %v1203, %v1067
        %v1221 = vsel %vm412, %v1205, %v1069
        %v1223 = vsel %vm412, %v1207, %v1071
        %v1225 = vsel %vm412, %v1209, %v1073
        %v1227 = vsel %vm412, %v1211, %v1075
        %vm1228 = vcmask 162816
        %v1230 = vsel %vm1228, %v1213, %v1081
        %v1232 = vsel %vm1228, %v1215, %v1083
        %v1234 = vsel %vm1228, %v1217, %v1085
        %v1236 = vsel %vm1228, %v1219, %v1087
        %v1238 = vsel %vm1228, %v1221, %v1089
        %v1240 = vsel %vm1228, %v1223, %v1091
        %v1242 = vsel %vm1228, %v1225, %v1093
        %v1244 = vsel %vm1228, %v1227, %v1095
        %vm1245 = vcmask 195584
        %v1247 = vsel %vm1245, %v1230, %v1098
        %v1249 = vsel %vm1245, %v1232, %v1100
        %v1251 = vsel %vm1245, %v1234, %v1102
        %v1253 = vsel %vm1245, %v1236, %v1104
        %v1255 = vsel %vm1245, %v1238, %v1106
        %v1257 = vsel %vm1245, %v1240, %v1108
        %v1259 = vsel %vm1245, %v1242, %v1110
        %v1261 = vsel %vm1245, %v1244, %v1112
        %vm1262 = vcmask 228352
        %v1264 = vsel %vm1262, %v1247, %v1126
        %v1266 = vsel %vm1262, %v1249, %v1128
        %v1268 = vsel %vm1262, %v1251, %v1130
        %v1270 = vsel %vm1262, %v1253, %v1132
        %v1272 = vsel %vm1262, %v1255, %v1134
        %v1274 = vsel %vm1262, %v1257, %v1136
        %v1276 = vsel %vm1262, %v1259, %v1138
        %v1278 = vsel %vm1262, %v1261, %v1140
        %vm1279 = vcmask 261120
        %v1281 = vsel %vm1279, %v1264, %v1146
        %v1283 = vsel %vm1279, %v1266, %v1148
        %v1285 = vsel %vm1279, %v1268, %v1150
        %v1287 = vsel %vm1279, %v1270, %v1152
        %v1289 = vsel %vm1279, %v1272, %v1154
        %v1291 = vsel %vm1279, %v1274, %v1156
        %v1293 = vsel %vm1279, %v1276, %v1158
        %v1295 = vsel %vm1279, %v1278, %v1160
        %v1296 = vld [vmem:[%s3] sm:$0xf]
        %v1297 = vld [vmem:[%s3 + $0x4] sm:$0xf]
        %v1298 = vld [vmem:[%s3 + $0x8] sm:$0xf]
        %v1299 = vld [vmem:[%s3 + $0xc] sm:$0xf]
        %v1300 = vld [vmem:[%s3 + $0x10] sm:$0x3]
        %v1301 = vld [vmem:[%s4] sm:$0x1]
        %v1303 = vlaneseq
        %v1304 = vshrl.u32 %v1303, 7
        %v1305 = vsub.s32 0, %v1304
        %v1306 = vrot.slane %v1301, %v1305
        %v1313 = vunpack.c.l.b16 %v1296
        %v1314 = vunpack.c.l.b16 %v1297
        %v1315 = vunpack.c.l.b16 %v1298
        %v1316 = vunpack.c.l.b16 %v1299
        %v1317 = vunpack.c.l.b16 %v1300
        %v1318 = vpack.c.b16 %v1314, %v1313
        %v1319 = vpack.c.b16 %v1316, %v1315
        %v1320 = vpack.c.b16 %v1317, %v1317
        %vm1323 = vcmask 293888
        %v1324 = vsel %vm1323, %v1281, 0
        %v1326 = vsel %vm1323, %v1283, 0
        %v1328 = vsel %vm1323, %v1285, 0
        %v1330 = vsel %vm1323, %v1287, 0
        %v1332 = vsel %vm1323, %v1289, 0
        %v1334 = vsel %vm1323, %v1291, 0
        %v1336 = vsel %vm1323, %v1293, 0
        %v1338 = vsel %vm1323, %v1295, 0
        %vm1340 = vcmask 1041408
        %v1342 = vsel %vm1340, %v1320, 0
        %1344 = vmatprep.subr.bf16.mxu0 0
        %1345 = vmatpush1.bf16.msra.mxu0 %v1318
        %1346 = vmatprep.subr.bf16.mxu0 0
        %1347 = vmatpush1.bf16.msra.mxu0 %v1319
        %1348 = vmatprep.subr.bf16.mxu0 0
        %1349 = vmatpush1.bf16.msra.mxu0 %v1342
        %1350 = vmatprep.subr.bf16.mxu0 0
        %1351 = vmatpush1.bf16.msra.mxu0 0
        %1352 = vmatprep.subr.bf16.mxu0 0
        %1353 = vmatpush1.bf16.msra.mxu0 0
        %1354 = vmatprep.subr.bf16.mxu0 0
        %1355 = vmatpush1.bf16.msra.mxu0 0
        %1356 = vmatprep.subr.bf16.mxu0 0
        %1357 = vmatpush1.bf16.msra.mxu0 0
        %1358 = vmatprep.subr.bf16.mxu0 0
        %1359 = vmatpush1.bf16.msra.mxu0 0
        %1360 = vmatprep.subr.bf16.mxu0 0
        %1361 = vmatpush1.bf16.msra.mxu0 0
        %1362 = vmatprep.subr.bf16.mxu0 0
        %1363 = vmatpush1.bf16.msra.mxu0 0
        %1364 = vmatprep.subr.bf16.mxu0 0
        %1365 = vmatpush1.bf16.msra.mxu0 0
        %1366 = vmatprep.subr.bf16.mxu0 0
        %1367 = vmatpush1.bf16.msra.mxu0 0
        %1368 = vmatprep.subr.bf16.mxu0 0
        %1369 = vmatpush1.bf16.msra.mxu0 0
        %1370 = vmatprep.subr.bf16.mxu0 0
        %1371 = vmatpush1.bf16.msra.mxu0 0
        %1372 = vmatprep.subr.bf16.mxu0 0
        %1373 = vmatpush1.bf16.msra.mxu0 0
        %1374 = vmatprep.subr.bf16.mxu0 0
        %1375 = vmatpush1.bf16.msra.mxu0 0
        %1376 = vmatprep.mubr.bf16.mxu0 0
        %1377 = vmatmul.mubr.bf16.gmra.mrb[0].mxu0 %v1324
        %v1378 = vpop.f32.mrb[0].mxu0
        %v1379 = vadd.f32 %v1306, %v1378
        %v1380 = vpop.f32.mrb[0].mxu0
        %v1381 = vpop.f32.mrb[0].mxu0
        %v1382 = vadd.f32 %v1306, %v1381
        %v1383 = vpop.f32.mrb[0].mxu0
        %1384 = vmatprep.mubr.bf16.mxu0 0
        %1385 = vmatmul.mubr.bf16.gmra.mrb[0].mxu0 %v1326
        %v1386 = vpop.f32.mrb[0].mxu0
        %v1387 = vadd.f32 %v1306, %v1386
        %v1388 = vpop.f32.mrb[0].mxu0
        %v1389 = vpop.f32.mrb[0].mxu0
        %v1390 = vadd.f32 %v1306, %v1389
        %v1391 = vpop.f32.mrb[0].mxu0
        %1392 = vmatprep.mubr.bf16.mxu0 0
        %1393 = vmatmul.mubr.bf16.gmra.mrb[0].mxu0 %v1328
        %v1394 = vpop.f32.mrb[0].mxu0
        %v1395 = vadd.f32 %v1306, %v1394
        %v1396 = vpop.f32.mrb[0].mxu0
        %v1397 = vpop.f32.mrb[0].mxu0
        %v1398 = vadd.f32 %v1306, %v1397
        %v1399 = vpop.f32.mrb[0].mxu0
        %1400 = vmatprep.mubr.bf16.mxu0 0
        %1401 = vmatmul.mubr.bf16.gmra.mrb[0].mxu0 %v1330
        %v1402 = vpop.f32.mrb[0].mxu0
        %v1403 = vadd.f32 %v1306, %v1402
        %v1404 = vpop.f32.mrb[0].mxu0
        %v1405 = vpop.f32.mrb[0].mxu0
        %v1406 = vadd.f32 %v1306, %v1405
        %v1407 = vpop.f32.mrb[0].mxu0
        %1408 = vmatprep.mubr.bf16.mxu0 0
        %1409 = vmatmul.mubr.bf16.gmra.mrb[0].mxu0 %v1332
        %v1410 = vpop.f32.mrb[0].mxu0
        %v1411 = vadd.f32 %v1306, %v1410
        %v1412 = vpop.f32.mrb[0].mxu0
        %v1413 = vpop.f32.mrb[0].mxu0
        %v1414 = vadd.f32 %v1306, %v1413
        %v1415 = vpop.f32.mrb[0].mxu0
        %1416 = vmatprep.mubr.bf16.mxu0 0
        %1417 = vmatmul.mubr.bf16.gmra.mrb[0].mxu0 %v1334
        %v1418 = vpop.f32.mrb[0].mxu0
        %v1419 = vadd.f32 %v1306, %v1418
        %v1420 = vpop.f32.mrb[0].mxu0
        %v1421 = vpop.f32.mrb[0].mxu0
        %v1422 = vadd.f32 %v1306, %v1421
        %v1423 = vpop.f32.mrb[0].mxu0
        %1424 = vmatprep.mubr.bf16.mxu0 0
        %1425 = vmatmul.mubr.bf16.gmra.mrb[0].mxu0 %v1336
        %v1426 = vpop.f32.mrb[0].mxu0
        %v1427 = vadd.f32 %v1306, %v1426
        %v1428 = vpop.f32.mrb[0].mxu0
        %v1429 = vpop.f32.mrb[0].mxu0
        %v1430 = vadd.f32 %v1306, %v1429
        %v1431 = vpop.f32.mrb[0].mxu0
        %1432 = vmatprep.mubr.bf16.mxu0 0
        %1433 = vmatmul.mubr.bf16.gmra.mrb[0].mxu0 %v1338
        %v1434 = vpop.f32.mrb[0].mxu0
        %v1435 = vadd.f32 %v1306, %v1434
        %v1436 = vpop.f32.mrb[0].mxu0
        %v1437 = vpop.f32.mrb[0].mxu0
        %v1438 = vadd.f32 %v1306, %v1437
        %v1439 = vpop.f32.mrb[0].mxu0
        %1440 = vdwg.mxu0
        %v1441 = vmax.f32 %v1379, 0.0
        %v1442 = vmax.f32 %v1382, 0.0
        %v1443 = vmax.f32 %v1387, 0.0
        %v1444 = vmax.f32 %v1390, 0.0
        %v1445 = vmax.f32 %v1395, 0.0
        %v1446 = vmax.f32 %v1398, 0.0
        %v1447 = vmax.f32 %v1403, 0.0
        %v1448 = vmax.f32 %v1406, 0.0
        %v1449 = vmax.f32 %v1411, 0.0
        %v1450 = vmax.f32 %v1414, 0.0
        %v1451 = vmax.f32 %v1419, 0.0
        %v1452 = vmax.f32 %v1422, 0.0
        %v1453 = vmax.f32 %v1427, 0.0
        %v1454 = vmax.f32 %v1430, 0.0
        %v1455 = vmax.f32 %v1435, 0.0
        %v1456 = vmax.f32 %v1438, 0.0
        %v1457 = vpack.c.bf16 %v1442, %v1441
        %v1458 = vpack.c.bf16 %v1444, %v1443
        %v1459 = vpack.c.bf16 %v1446, %v1445
        %v1460 = vpack.c.bf16 %v1448, %v1447
        %v1461 = vpack.c.bf16 %v1450, %v1449
        %v1462 = vpack.c.bf16 %v1452, %v1451
        %v1463 = vpack.c.bf16 %v1454, %v1453
        %v1464 = vpack.c.bf16 %v1456, %v1455
        %vm1465 = vsmask.f32 3328
        %vm1466 = vsmask.f32 7440
        %vm1467 = vmor %vm1465, %vm1466
        %v1469 = vshrl.u32 %v295, 16
        %v1471 = vrot.slane %v1469, 4
        %v1472 = vshll.u32 %v295, 16
        %v1474 = vrot.slane %v1472, 5
        %v1475 = vor.u32 %v1471, %v1474
        %v1476 = vrot.slane %v1475, 4
        %v1478 = vshll.u32 %v296, 16
        %v1480 = vrot.slane %v1478, 5
        %v1481 = vsel %vm1467, %v1476, %v1480
        %v1482 = vshrl.u32 %v296, 16
        %v1484 = vrot.slane %v1482, 4
        %v1485 = vor.u32 %v1484, %v1480
        %v1486 = vrot.slane %v1485, 4
        %v1488 = vshll.u32 %v297, 16
        %v1490 = vrot.slane %v1488, 5
        %v1491 = vsel %vm1467, %v1486, %v1490
        %v1493 = vshrl.u32 %v298, 16
        %v1495 = vrot.slane %v1493, 4
        %v1496 = vshll.u32 %v298, 16
        %v1498 = vrot.slane %v1496, 5
        %v1499 = vor.u32 %v1495, %v1498
        %v1500 = vrot.slane %v1499, 4
        %v1502 = vshll.u32 %v299, 16
        %v1504 = vrot.slane %v1502, 5
        %v1505 = vsel %vm1467, %v1500, %v1504
        %v1506 = vshrl.u32 %v299, 16
        %v1508 = vrot.slane %v1506, 4
        %v1509 = vor.u32 %v1508, %v1504
        %v1510 = vrot.slane %v1509, 4
        %v1512 = vshll.u32 %v300, 16
        %v1514 = vrot.slane %v1512, 5
        %v1515 = vsel %vm1467, %v1510, %v1514
        %v1517 = vshrl.u32 %v301, 16
        %v1519 = vrot.slane %v1517, 4
        %v1520 = vshll.u32 %v301, 16
        %v1522 = vrot.slane %v1520, 5
        %v1523 = vor.u32 %v1519, %v1522
        %v1524 = vrot.slane %v1523, 4
        %v1526 = vshll.u32 %v302, 16
        %v1528 = vrot.slane %v1526, 5
        %v1529 = vsel %vm1467, %v1524, %v1528
        %v1530 = vshrl.u32 %v302, 16
        %v1532 = vrot.slane %v1530, 4
        %v1533 = vor.u32 %v1532, %v1528
        %v1534 = vrot.slane %v1533, 4
        %v1536 = vshll.u32 %v303, 16
        %v1538 = vrot.slane %v1536, 5
        %v1539 = vsel %vm1467, %v1534, %v1538
        %v1541 = vshrl.u32 %v304, 16
        %v1543 = vrot.slane %v1541, 4
        %v1544 = vshll.u32 %v304, 16
        %v1546 = vrot.slane %v1544, 5
        %v1547 = vor.u32 %v1543, %v1546
        %v1548 = vrot.slane %v1547, 4
        %v1550 = vshll.u32 %v305, 16
        %v1552 = vrot.slane %v1550, 5
        %v1553 = vsel %vm1467, %v1548, %v1552
        %v1554 = vshrl.u32 %v305, 16
        %v1556 = vrot.slane %v1554, 4
        %v1557 = vor.u32 %v1556, %v1552
        %v1558 = vrot.slane %v1557, 4
        %v1560 = vshll.u32 %v306, 16
        %v1562 = vrot.slane %v1560, 5
        %v1563 = vsel %vm1467, %v1558, %v1562
        %v1565 = vshrl.u32 %v307, 16
        %v1567 = vrot.slane %v1565, 4
        %v1568 = vshll.u32 %v307, 16
        %v1570 = vrot.slane %v1568, 5
        %v1571 = vor.u32 %v1567, %v1570
        %v1572 = vrot.slane %v1571, 4
        %v1574 = vshll.u32 %v308, 16
        %v1576 = vrot.slane %v1574, 5
        %v1577 = vsel %vm1467, %v1572, %v1576
        %v1578 = vshrl.u32 %v308, 16
        %v1580 = vrot.slane %v1578, 4
        %v1581 = vor.u32 %v1580, %v1576
        %v1582 = vrot.slane %v1581, 4
        %v1584 = vshll.u32 %v309, 16
        %v1586 = vrot.slane %v1584, 5
        %v1587 = vsel %vm1467, %v1582, %v1586
        %v1589 = vshrl.u32 %v310, 16
        %v1591 = vrot.slane %v1589, 4
        %v1592 = vshll.u32 %v310, 16
        %v1594 = vrot.slane %v1592, 5
        %v1595 = vor.u32 %v1591, %v1594
        %v1596 = vrot.slane %v1595, 4
        %v1598 = vshll.u32 %v311, 16
        %v1600 = vrot.slane %v1598, 5
        %v1601 = vsel %vm1467, %v1596, %v1600
        %v1602 = vshrl.u32 %v311, 16
        %v1604 = vrot.slane %v1602, 4
        %v1605 = vor.u32 %v1604, %v1600
        %v1606 = vrot.slane %v1605, 4
        %v1608 = vshll.u32 %v312, 16
        %v1610 = vrot.slane %v1608, 5
        %v1611 = vsel %vm1467, %v1606, %v1610
        %v1613 = vshrl.u32 %v313, 16
        %v1615 = vrot.slane %v1613, 4
        %v1616 = vshll.u32 %v313, 16
        %v1618 = vrot.slane %v1616, 5
        %v1619 = vor.u32 %v1615, %v1618
        %v1620 = vrot.slane %v1619, 4
        %v1622 = vshll.u32 %v314, 16
        %v1624 = vrot.slane %v1622, 5
        %v1625 = vsel %vm1467, %v1620, %v1624
        %v1626 = vshrl.u32 %v314, 16
        %v1628 = vrot.slane %v1626, 4
        %v1629 = vor.u32 %v1628, %v1624
        %v1630 = vrot.slane %v1629, 4
        %v1632 = vshll.u32 %v315, 16
        %v1634 = vrot.slane %v1632, 5
        %v1635 = vsel %vm1467, %v1630, %v1634
        %v1637 = vshrl.u32 %v316, 16
        %v1639 = vrot.slane %v1637, 4
        %v1640 = vshll.u32 %v316, 16
        %v1642 = vrot.slane %v1640, 5
        %v1643 = vor.u32 %v1639, %v1642
        %v1644 = vrot.slane %v1643, 4
        %v1646 = vshll.u32 %v317, 16
        %v1648 = vrot.slane %v1646, 5
        %v1649 = vsel %vm1467, %v1644, %v1648
        %v1650 = vshrl.u32 %v317, 16
        %v1652 = vrot.slane %v1650, 4
        %v1653 = vor.u32 %v1652, %v1648
        %v1654 = vrot.slane %v1653, 4
        %v1656 = vshll.u32 %v318, 16
        %v1658 = vrot.slane %v1656, 5
        %v1659 = vsel %vm1467, %v1654, %v1658
        %v1660 = vunpack.c.l.b16 %v1481
        %v1661 = vunpack.c.l.b16 %v1491
        %v1662 = vunpack.c.l.b16 %v1505
        %v1663 = vunpack.c.l.b16 %v1515
        %v1664 = vunpack.c.l.b16 %v1529
        %v1665 = vunpack.c.l.b16 %v1539
        %v1666 = vunpack.c.l.b16 %v1553
        %v1667 = vunpack.c.l.b16 %v1563
        %v1668 = vunpack.c.l.b16 %v1577
        %v1669 = vunpack.c.l.b16 %v1587
        %v1670 = vunpack.c.l.b16 %v1601
        %v1671 = vunpack.c.l.b16 %v1611
        %v1672 = vunpack.c.l.b16 %v1625
        %v1673 = vunpack.c.l.b16 %v1635
        %v1674 = vunpack.c.l.b16 %v1649
        %v1675 = vunpack.c.l.b16 %v1659
        %v1676 = vpack.c.b16 %v1661, %v1660
        %v1677 = vpack.c.b16 %v1663, %v1662
        %v1678 = vpack.c.b16 %v1665, %v1664
        %v1679 = vpack.c.b16 %v1667, %v1666
        %v1680 = vpack.c.b16 %v1669, %v1668
        %v1681 = vpack.c.b16 %v1671, %v1670
        %v1682 = vpack.c.b16 %v1673, %v1672
        %v1683 = vpack.c.b16 %v1675, %v1674
        %1684 = vrot.lane.b32.xlu0 %v1676, 4
        %v1685 = vpop.permute.xlu0 %1684
        %1686 = vrot.lane.b32.xlu0 %v1677, 4
        %v1687 = vpop.permute.xlu0 %1686
        %1688 = vrot.lane.b32.xlu0 %v1678, 4
        %v1689 = vpop.permute.xlu0 %1688
        %1690 = vrot.lane.b32.xlu0 %v1679, 4
        %v1691 = vpop.permute.xlu0 %1690
        %1692 = vrot.lane.b32.xlu0 %v1680, 4
        %v1693 = vpop.permute.xlu0 %1692
        %1694 = vrot.lane.b32.xlu0 %v1681, 4
        %v1695 = vpop.permute.xlu0 %1694
        %1696 = vrot.lane.b32.xlu0 %v1682, 4
        %v1697 = vpop.permute.xlu0 %1696
        %1698 = vrot.lane.b32.xlu0 %v1683, 4
        %v1699 = vpop.permute.xlu0 %1698
        %v1702 = vsel %vm1161, %v1457, %v1685
        %v1705 = vsel %vm1161, %v1458, %v1687
        %v1708 = vsel %vm1161, %v1459, %v1689
        %v1711 = vsel %vm1161, %v1460, %v1691
        %v1714 = vsel %vm1161, %v1461, %v1693
        %v1717 = vsel %vm1161, %v1462, %v1695
        %v1720 = vsel %vm1161, %v1463, %v1697
        %v1723 = vsel %vm1161, %v1464, %v1699
        %v1724 = vld [vmem:[%s5] sm:$0xf]
        %v1725 = vld [vmem:[%s5 + $0x4] sm:$0xf]
        %v1726 = vld [vmem:[%s6] sm:$0xff]
        %v1727 = vld [vmem:[%s6 + $0x8] sm:$0xff]
        %1729 = vset.pattern.permute.xlu0 0
        %1730 = vperm.xlu0 %1729, %v1726
        %v1731 = vpop.permute.xlu0 %1730
        %1734 = vset.pattern.permute.xlu0 0
        %1735 = vperm.xlu0 %1734, %v1727
        %v1736 = vpop.permute.xlu0 %1735
        %v1740 = vunpack.c.l.b16 %v1724
        %v1741 = vunpack.c.l.b16 %v1725
        %v1742 = vpack.c.b16 %v1741, %v1740
        %v1744 = vsel %vm1228, %v1742, 0
        %v1746 = vsel %vm1228, %v1702, 0
        %v1748 = vsel %vm1228, %v1705, 0
        %v1750 = vsel %vm1228, %v1708, 0
        %v1752 = vsel %vm1228, %v1711, 0
        %v1754 = vsel %vm1228, %v1714, 0
        %v1756 = vsel %vm1228, %v1717, 0
        %v1758 = vsel %vm1228, %v1720, 0
        %v1760 = vsel %vm1228, %v1723, 0
        %1762 = vmatprep.subr.bf16.mxu0 0
        %1763 = vmatpush1.bf16.xpose.msra.mxu0 %v1746
        %1764 = vmatprep.subr.bf16.mxu0 0
        %1765 = vmatpush1.bf16.xpose.msra.mxu0 %v1748
        %1766 = vmatprep.subr.bf16.mxu0 0
        %1767 = vmatpush1.bf16.xpose.msra.mxu0 %v1750
        %1768 = vmatprep.subr.bf16.mxu0 0
        %1769 = vmatpush1.bf16.xpose.msra.mxu0 %v1752
        %1770 = vmatprep.subr.bf16.mxu0 0
        %1771 = vmatpush1.bf16.xpose.msra.mxu0 %v1754
        %1772 = vmatprep.subr.bf16.mxu0 0
        %1773 = vmatpush1.bf16.xpose.msra.mxu0 %v1756
        %1774 = vmatprep.subr.bf16.mxu0 0
        %1775 = vmatpush1.bf16.xpose.msra.mxu0 %v1758
        %1776 = vmatprep.subr.bf16.mxu0 0
        %1777 = vmatpush1.bf16.xpose.msra.mxu0 %v1760
        %1778 = vmatprep.subr.bf16.mxu0 0
        %1779 = vmatpush1.bf16.xpose.msra.mxu0 0
        %1780 = vmatprep.subr.bf16.mxu0 0
        %1781 = vmatpush1.bf16.xpose.msra.mxu0 0
        %1782 = vmatprep.subr.bf16.mxu0 0
        %1783 = vmatpush1.bf16.xpose.msra.mxu0 0
        %1784 = vmatprep.subr.bf16.mxu0 0
        %1785 = vmatpush1.bf16.xpose.msra.mxu0 0
        %1786 = vmatprep.subr.bf16.mxu0 0
        %1787 = vmatpush1.bf16.xpose.msra.mxu0 0
        %1788 = vmatprep.subr.bf16.mxu0 0
        %1789 = vmatpush1.bf16.xpose.msra.mxu0 0
        %1790 = vmatprep.subr.bf16.mxu0 0
        %1791 = vmatpush1.bf16.xpose.msra.mxu0 0
        %1792 = vmatprep.subr.bf16.mxu0 0
        %1793 = vmatpush1.bf16.xpose.msra.mxu0 0
        %1794 = vmatprep.mubr.bf16.mxu0 0
        %1795 = vmatmul.mubr.bf16.gmra.mrb[0].mxu0 %v1744
        %v1796 = vpop.f32.mrb[0].mxu0
        %v1797 = vadd.f32 %v1731, %v1796
        %v1798 = vpop.f32.mrb[0].mxu0
        %v1799 = vpop.f32.mrb[0].mxu0
        %v1800 = vadd.f32 %v1736, %v1799
        %v1801 = vpop.f32.mrb[0].mxu0
        %1802 = vdwg.mxu0
        %v1803 = vmax.f32 %v1797, 0.0
        %v1804 = vmax.f32 %v1800, 0.0
        %1805 = vst [vmem:[%s281] sm:$0xff] %v1803
        %1806 = vst [vmem:[%s281 + $0x8] sm:$0xff] %v1804
        %s1807 = sand.u32 %s192, 1
        %s1808 = sand.u32 %s192, 1
        %s1809 = smul.addr %s1808, 16
        %s1810 = scalar_lea.vmem [#allocation2], %s1809
        // Predicated region
        $region49: #{bottleneck_forward.1} parent=47 // pred_check
          %p1811 = pneg %p202
        $region50: #{bottleneck_forward.1} parent=47 // pred_check_branch
          %1813 = sbr.rel (%p1811) target = $region52
        $region51: #{bottleneck_forward.1} parent=47 // pred_region
          %s1814 = smul.addr %s22, 4
          %s1815 = sadd.s32 %s23, %s1814
          %s1816 = smul.addr %s1815, 8
          %s1817 = scalar_lea.vmem %s7, %s1816
          // Predicated region
          $region53: #{bottleneck_forward.1} parent=51 // pred_check
            _
          $region54: #{bottleneck_forward.1} parent=51 // pred_check_branch
            %1819 = sbr.rel (0) target = $region56
          $region55: #{bottleneck_forward.1} parent=51 // pred_region
            // Predicated region
            $region57: #{bottleneck_forward.1} parent=55 // pred_check
              _
            $region58: #{bottleneck_forward.1} parent=55 // pred_check_branch
              %1821 = sbr.rel (0) target = $region60
            $region59: #{bottleneck_forward.1} parent=55 // pred_region
              // Predicated region
              $region72: #{bottleneck_forward.1} parent=59 // pred_check
                _
              $region73: #{bottleneck_forward.1} parent=59 // pred_check_branch
                %1838 = sbr.rel (0) target = $region75
              $region74: #{bottleneck_forward.1} parent=59 // pred_region
                loop: start=0, step=1, limit=1
                $region76: #{bottleneck_forward.1} parent=74 // loop_pre_header
                  _
                $region77: #{bottleneck_forward.1} parent=74 // loop_header
                  %s1840 = sphi 0, %s1844
                  %p1841 = scmp.ge.s32.totalorder %s1840, 1
                  %s1845 = sphi %s1810, %s1810
                  %s1846 = sphi %s1817, %s1817
                $region78: #{bottleneck_forward.1} parent=74 // loop_header_branch
                  %1843 = sbr.rel (%p1841) target = $region82
                $region79: #{bottleneck_forward.1} parent=74 // loop_body
                  %v1847 = vld [vmem:[%s1845] sm:$0xff]
                  %1848 = vst [vmem:[%s1846] sm:$0xff] %v1847
                  %v1849 = vld [vmem:[%s1845 + $0x8] sm:$0xff]
                  %1850 = vst [vmem:[%s1846 + $0x10] sm:$0xff] %v1849
                $region80: #{bottleneck_forward.1} parent=74 // loop_footer
                  %s1844 = sadd.s32 1, %s1840
                $region81: #{bottleneck_forward.1} parent=74 // loop_footer_branch
                  %1839 = sbr.rel target = $region77
                $region82: #{bottleneck_forward.1} parent=74 // loop_exit
                  _
              $region75: #{bottleneck_forward.1} parent=59 // pred_fallthru
                _
              // Predicated region
              $region83: #{bottleneck_forward.1} parent=59 // pred_check
                _
              $region84: #{bottleneck_forward.1} parent=59 // pred_check_branch
                %1852 = sbr.rel target = $region86
              $region85: #{bottleneck_forward.1} parent=59 // pred_region
                _
              $region86: #{bottleneck_forward.1} parent=59 // pred_fallthru
                _
            $region60: #{bottleneck_forward.1} parent=55 // pred_fallthru
              _
            // Predicated region
            $region61: #{bottleneck_forward.1} parent=55 // pred_check
              _
            $region62: #{bottleneck_forward.1} parent=55 // pred_check_branch
              %1823 = sbr.rel target = $region64
            $region63: #{bottleneck_forward.1} parent=55 // pred_region
              loop: start=0, step=1, limit=1
              $region65: #{bottleneck_forward.1} parent=63 // loop_pre_header
                _
              $region66: #{bottleneck_forward.1} parent=63 // loop_header
                %s1826 = sphi 0, %s1830
                %p1827 = scmp.ge.s32.totalorder %s1826, 1
                %s1831 = sphi %s1810, %s1810
                %s1832 = sphi %s1817, %s1817
              $region67: #{bottleneck_forward.1} parent=63 // loop_header_branch
                %1829 = sbr.rel (%p1827) target = $region71
              $region68: #{bottleneck_forward.1} parent=63 // loop_body
                %v1833 = vld [vmem:[%s1831] sm:$0xff]
                %1834 = vst [vmem:[%s1832] sm:$0xff] %v1833
                %v1835 = vld [vmem:[%s1831 + $0x8] sm:$0xff]
                %1836 = vst [vmem:[%s1832 + $0x10] sm:$0xff] %v1835
              $region69: #{bottleneck_forward.1} parent=63 // loop_footer
                %s1830 = sadd.s32 1, %s1826
              $region70: #{bottleneck_forward.1} parent=63 // loop_footer_branch
                %1825 = sbr.rel target = $region66
              $region71: #{bottleneck_forward.1} parent=63 // loop_exit
                _
            $region64: #{bottleneck_forward.1} parent=55 // pred_fallthru
              _
          $region56: #{bottleneck_forward.1} parent=51 // pred_fallthru
            _
          %1853 = vnop
        $region52: #{bottleneck_forward.1} parent=47 // pred_fallthru
          _
      $region48: #{bottleneck_forward.1} parent=5 // pred_fallthru
        _
      %p1854 = scmp.le.s32.totalorder 2, %s13
      // Predicated region
      $region87: #{bottleneck_forward.1} parent=5 // pred_check
        %p1855 = pneg %p1854
      $region88: #{bottleneck_forward.1} parent=5 // pred_check_branch
        %1857 = sbr.rel (%p1855) target = $region90
      $region89: #{bottleneck_forward.1} parent=5 // pred_region
        %s1858 = ssub.s32 %s13, 2
        // Predicated region
        $region91: #{bottleneck_forward.1} parent=89 // pred_check
          %p1859 = pneg %p208
        $region92: #{bottleneck_forward.1} parent=89 // pred_check_branch
          %1861 = sbr.rel (%p1859) target = $region94
        $region93: #{bottleneck_forward.1} parent=89 // pred_region
          %s1862 = sand.u32 %s193, 1
          %s1863 = sand.u32 %s193, 1
          %s1864 = smul.addr %s1863, 16
          %s1865 = scalar_lea.vmem [#allocation2], %s1864
        $region94: #{bottleneck_forward.1} parent=89 // pred_fallthru
          _
      $region90: #{bottleneck_forward.1} parent=5 // pred_fallthru
        _
    $region6: #{bottleneck_forward.1} parent=1 // loop_footer
      %s17 = sadd.s32 1, %s13
    $region7: #{bottleneck_forward.1} parent=1 // loop_footer_branch
      %12 = sbr.rel target = $region3
    $region8: #{bottleneck_forward.1} parent=1 // loop_exit
      _

</llo_original>
